<compile_context>
chip_gen: v5e
topology: v5e:2x2
jax: 0.10.0
libtpu: 0.0.40
codegen_flags: <defaults>
</compile_context>

<pallas_src>
import functools
import math

import jax
import jax.numpy as jnp
from jax.experimental import pallas as pl
from jax.experimental.pallas import tpu as pltpu

LN_EPS = 1e-5


# ------------------------------ kernel helpers ------------------------------ #

def _layernorm(x, gamma, beta):
    # x: (S, H) f32; gamma/beta: (1, H) f32; normalize over the hidden (lane) axis.
    mu = jnp.mean(x, axis=-1, keepdims=True)
    xc = x - mu
    var = jnp.mean(xc * xc, axis=-1, keepdims=True)
    return xc * jax.lax.rsqrt(var + LN_EPS) * gamma + beta


def _gelu_tanh(y):
    # TODO(synk): HF RoBERTa uses exact erf-GELU; tanh approximation kept since erf
    # lowering in Mosaic is not guaranteed.  Factored form minimizes VALU multiplies.
    c = math.sqrt(2.0 / math.pi)
    return 0.5 * y * (1.0 + jnp.tanh(c * y * (1.0 + 0.044715 * y * y)))


# ------------------------------- Pallas kernel ------------------------------ #

def _encoder_kernel(x_ref, mask_ref, embg_ref, embb_ref,
                    wqkv_ref, bqkv_ref, wo_ref, bo_ref,
                    ln1g_ref, ln1b_ref, wi_ref, bi_ref, wf_ref, bf_ref,
                    ln2g_ref, ln2b_ref, o_ref, ctx_ref, *, num_heads):
    """Embedding LayerNorm (layer 0 only) + one full transformer layer per grid step.

    Grid = (batch, layer).  The output block has the same index for every layer
    step, so it stays resident in VMEM for the whole layer sweep and doubles as
    the activation carry: activations never round-trip to HBM between layers.
    """
    l = pl.program_id(1)

    # Layer 0: consume the raw embedding sum and apply the embedding LayerNorm.
    @pl.when(l == 0)
    def _():
        x = x_ref[0].astype(jnp.float32)
        o_ref[0] = _layernorm(x, embg_ref[...], embb_ref[...]).astype(o_ref.dtype)

    h = o_ref[0].astype(jnp.float32)            # (S, H) activation carry
    S, H = h.shape
    dH = H // num_heads
    amask = mask_ref[...].astype(jnp.float32)   # (1, 1, S) additive key mask

    # ---- fused QKV projection: ONE lane-dense (S, 3H) matmul, bf16 x bf16 -> f32.
    # The 1/sqrt(dH) attention scale is pre-folded into the Q columns of wqkv/bqkv.
    wqkv = wqkv_ref[0]
    qkv = (jnp.dot(h.astype(wqkv.dtype), wqkv, preferred_element_type=jnp.float32)
           + bqkv_ref[0]).astype(jnp.bfloat16)   # keep bf16: only feeds bf16 MXU dots

    # ---- multi-head self-attention: relayout to (nH, S, dH) once, batch all heads.
    q, k, v = qkv[:, :H], qkv[:, H:2 * H], qkv[:, 2 * H:]
    qh = jnp.stack([q[:, i * dH:(i + 1) * dH] for i in range(num_heads)], axis=0)
    kh = jnp.stack([k[:, i * dH:(i + 1) * dH] for i in range(num_heads)], axis=0)
    vh = jnp.stack([v[:, i * dH:(i + 1) * dH] for i in range(num_heads)], axis=0)

    s = jnp.einsum('hqd,hkd->hqk', qh, kh,
                   preferred_element_type=jnp.float32)          # (nH, S, S)
    s = s + amask                                # key mask added once for all heads
    s = s - jnp.max(s, axis=-1, keepdims=True)
    p = jnp.exp(s)                               # f32 softmax (v5e-safe)
    p = p * pl.reciprocal(jnp.sum(p, axis=-1, keepdims=True), approx=True)
    ctx = jnp.einsum('hqk,hkd->hqd', p.astype(jnp.bfloat16), vh,
                     preferred_element_type=jnp.float32)        # (nH, S, dH)

    # ---- merge heads into lane slices of a bf16 buffer, then ONE (S,H)@(H,H) Wo
    # matmul (K = H, MXU fully fed) instead of nH K=dH matmuls + f32 accumulation.
    for i in range(num_heads):
        ctx_ref[:, i * dH:(i + 1) * dH] = ctx[i].astype(jnp.bfloat16)
    attn = jnp.dot(ctx_ref[...], wo_ref[0],
                   preferred_element_type=jnp.float32) + bo_ref[0]

    # ---- residual + LayerNorm 1 (fused, no HBM round trip)
    h1 = _layernorm(h + attn, ln1g_ref[0], ln1b_ref[0])

    # ---- FFN (wi -> GELU -> wf) + residual + LayerNorm 2
    # TODO(synk): chunk over S at real shapes so `inter` (512x3072 f32) is never
    # fully live (v7x 64 MiB VMEM).
    inter = jnp.dot(h1.astype(wi_ref.dtype), wi_ref[0],
                    preferred_element_type=jnp.float32) + bi_ref[0]
    inter = _gelu_tanh(inter)
    ffn = jnp.dot(inter.astype(wf_ref.dtype), wf_ref[0],
                  preferred_element_type=jnp.float32) + bf_ref[0]
    o_ref[0] = _layernorm(h1 + ffn, ln2g_ref[0], ln2b_ref[0]).astype(o_ref.dtype)


# ------------------------------ Pallas wrapper ------------------------------- #

def _vmem_limit_bytes(S, H, I, num_heads):
    """Rough VMEM footprint (double-buffered weights + live temporaries) with 2x
    headroom, clamped to [8 MiB, 64 MiB] (64 MiB = v7x physical VMEM per core)."""
    bf16, f32 = 2, 4
    weights = 2 * bf16 * (3 * H * H + H * H + 2 * H * I)        # 2x-buffered matmul weights
    vectors = 2 * f32 * (3 * H + 9 * H + I) + 2 * f32 * S       # biases / LN params / mask
    io_blocks = 2 * 2 * f32 * S * H                             # emb in + activation out
    temps = (f32 * (4 * S * H + 2 * num_heads * S * S + 2 * S * I)
             + bf16 * (S * 3 * H + 4 * S * H))
    est = weights + vectors + io_blocks + temps
    return int(min(64 * 1024 * 1024, max(8 * 1024 * 1024, 2 * est)))


def pallas_encoder(emb, add_mask, emb_g, emb_b, lp, *, num_heads, num_layers):
    """emb: (B,S,H) f32 embedding sums; add_mask: (B,1,S) additive key mask;
    lp: stacked per-layer params (leading L axis).  Returns (B,S,H) hidden states."""
    B, S, H = emb.shape
    I = lp["wi"].shape[-1]

    def act_spec():
        return pl.BlockSpec((1, S, H), lambda b, l: (b, 0, 0))

    def const_spec(shape):
        # Constant across the whole grid (embedding LN params).
        return pl.BlockSpec(shape, lambda b, l: (0,) * len(shape))

    def layer_spec(shape):
        # One layer's slice per grid step along the 'arbitrary' layer axis; the
        # default double-buffering prefetches layer l+1 behind layer l's compute.
        return pl.BlockSpec((1,) + shape, lambda b, l: (l,) + (0,) * len(shape))

    kernel = functools.partial(_encoder_kernel, num_heads=num_heads)

    return pl.pallas_call(
        kernel,
        grid=(B, num_layers),
        in_specs=[
            act_spec(),                                        # embedding sums (pre-LN)
            pl.BlockSpec((1, 1, S), lambda b, l: (b, 0, 0)),   # additive key mask
            const_spec((1, H)), const_spec((1, H)),            # embedding LN
            layer_spec((H, 3 * H)), layer_spec((1, 3 * H)),    # fused QKV (scale folded)
            layer_spec((H, H)), layer_spec((1, H)),            # attention out proj
            layer_spec((1, H)), layer_spec((1, H)),            # LN1
            layer_spec((H, I)), layer_spec((1, I)),            # FFN in
            layer_spec((I, H)), layer_spec((1, H)),            # FFN out
            layer_spec((1, H)), layer_spec((1, H)),            # LN2
        ],
        out_specs=act_spec(),
        out_shape=jax.ShapeDtypeStruct((B, S, H), jnp.float32),
        scratch_shapes=[pltpu.VMEM((S, H), jnp.bfloat16)],     # merged-heads ctx buffer
        compiler_params=pltpu.CompilerParams(
            dimension_semantics=("parallel", "arbitrary"),
            vmem_limit_bytes=_vmem_limit_bytes(S, H, I, num_heads)),
    )(emb, add_mask, emb_g, emb_b,
      lp["wqkv"], lp["bqkv"], lp["wo"], lp["bo"],
      lp["ln1_g"], lp["ln1_b"], lp["wi"], lp["bi"],
      lp["wf"], lp["bf"], lp["ln2_g"], lp["ln2_b"])


# ------------------------------- Model glue --------------------------------- #

def init_params(key, *, vocab_size, hidden, num_heads, num_layers,
                intermediate, max_pos):
    std = 0.02
    n_keys = 3 + 4 * num_layers + 1
    keys = iter(jax.random.split(key, n_keys))
    norm = lambda k, shape: jax.random.normal(k, shape, jnp.float32) * std

    params = {
        "num_heads": num_heads,
        "word_emb": norm(next(keys), (vocab_size, hidden)),
        "pos_emb": norm(next(keys), (max_pos, hidden)),
        "type_emb": norm(next(keys), (1, hidden)),
        "emb_ln_g": jnp.ones((hidden,), jnp.float32),
        "emb_ln_b": jnp.zeros((hidden,), jnp.float32),
        "layers": [],
    }
    for _ in range(num_layers):
        params["layers"].append({
            "wqkv": norm(next(keys), (hidden, 3 * hidden)),   # Q|K|V fused along N
            "bqkv": jnp.zeros((3 * hidden,), jnp.float32),
            "wo": norm(next(keys), (hidden, hidden)),
            "bo": jnp.zeros((hidden,), jnp.float32),
            "ln1_g": jnp.ones((hidden,), jnp.float32),
            "ln1_b": jnp.zeros((hidden,), jnp.float32),
            "wi": norm(next(keys), (hidden, intermediate)),
            "bi": jnp.zeros((intermediate,), jnp.float32),
            "wf": norm(next(keys), (intermediate, hidden)),
            "bf": jnp.zeros((hidden,), jnp.float32),
            "ln2_g": jnp.ones((hidden,), jnp.float32),
            "ln2_b": jnp.zeros((hidden,), jnp.float32),
        })
    # self.pooler = nn.Linear(H, H) exists in __init__ but is unused in forward.
    params["pooler_w"] = norm(next(keys), (hidden, hidden))
    params["pooler_b"] = jnp.zeros((hidden,), jnp.float32)
    return params


def stack_layer_params(params):
    """Stack per-layer weights into (L, ...) arrays for the layer grid axis.

    Also folds the 1/sqrt(head_dim) attention scale into the Q columns of the fused
    QKV projection (saves per-head (S,S) scaling in-kernel) and casts matmul weights
    to bf16 (MXU input dtype).  Biases / LN params stay f32.
    """
    layers = params["layers"]
    L = len(layers)
    H = params["word_emb"].shape[1]
    I = layers[0]["wi"].shape[1]
    scale = 1.0 / math.sqrt(H // params["num_heads"])

    def stk(name):
        return jnp.stack([lyr[name] for lyr in layers], axis=0)

    wqkv = stk("wqkv")                            # (L, H, 3H) f32
    bqkv = stk("bqkv")                            # (L, 3H)   f32
    wqkv = wqkv.at[:, :, :H].multiply(scale)      # fold attention scale into Q
    bqkv = bqkv.at[:, :H].multiply(scale)

    return {
        "wqkv": wqkv.astype(jnp.bfloat16),
        "bqkv": bqkv.reshape(L, 1, 3 * H),
        "wo": stk("wo").astype(jnp.bfloat16),
        "bo": stk("bo").reshape(L, 1, H),
        "ln1_g": stk("ln1_g").reshape(L, 1, H),
        "ln1_b": stk("ln1_b").reshape(L, 1, H),
        "wi": stk("wi").astype(jnp.bfloat16),
        "bi": stk("bi").reshape(L, 1, I),
        "wf": stk("wf").astype(jnp.bfloat16),
        "bf": stk("bf").reshape(L, 1, H),
        "ln2_g": stk("ln2_g").reshape(L, 1, H),
        "ln2_b": stk("ln2_b").reshape(L, 1, H),
    }


def distilroberta_encoder_forward(params, input_ids, mask=None):
    B, S = input_ids.shape
    H = params["word_emb"].shape[1]

    if mask is None:
        mask = jnp.ones((B, S), jnp.float32)
    mask = mask.astype(jnp.float32)

    # Mask-aware RoBERTa position ids: cumsum(mask)*mask + padding_idx (padding_idx=1).
    pos_ids = (jnp.cumsum(mask, axis=1) * mask).astype(jnp.int32) + 1

    # Embedding gathers are XLA glue; everything downstream (embedding LayerNorm +
    # all transformer layers) runs inside ONE fused Pallas kernel.
    emb = (jnp.take(params["word_emb"], input_ids, axis=0)
           + jnp.take(params["pos_emb"], pos_ids, axis=0)
           + params["type_emb"][0][None, None, :])
    add_mask = (1.0 - mask)[:, None, :] * -1e9         # (B, 1, S) additive key mask

    stacked = stack_layer_params(params)
    h = pallas_encoder(emb, add_mask,
                       params["emb_ln_g"].reshape(1, H),
                       params["emb_ln_b"].reshape(1, H),
                       stacked,
                       num_heads=params["num_heads"],
                       num_layers=len(params["layers"]))
    # feat = sequence_output[:, 0, :]   (dropout omitted: eval mode)
    return h[:, 0, :]


# ----------------------------------- Main ----------------------------------- #

if __name__ == "__main__":
    B, S = 2, 8
    VOCAB, HIDDEN, HEADS, LAYERS, INTER, MAXPOS = 100, 32, 4, 2, 64, 32

    key = jax.random.PRNGKey(0)
    k_params, k_ids = jax.random.split(key)

    params = init_params(k_params, vocab_size=VOCAB, hidden=HIDDEN,
                         num_heads=HEADS, num_layers=LAYERS,
                         intermediate=INTER, max_pos=MAXPOS)

    input_ids = jax.random.randint(k_ids, (B, S), 0, VOCAB, dtype=jnp.int32)
    mask = jnp.ones((B, S), jnp.float32).at[1, 6:].set(0.0)  # pad last 2 tokens of item 1

    feat = distilroberta_encoder_forward(params, input_ids, mask)
    feat = jax.block_until_ready(feat)
    assert feat.shape == (B, HIDDEN) and feat.dtype == jnp.float32

    print("KERNEL_OK")
</pallas_src>

<mosaic_0001>
module attributes {stable_mosaic.version = 11 : i64} {
  func.func @_encoder_kernel(%arg0: i32, %arg1: i32, %arg2: memref<1x8x32xf32, #tpu.memory_space<vmem>>, %arg3: memref<1x1x8xf32, #tpu.memory_space<vmem>>, %arg4: memref<1x32xf32, #tpu.memory_space<vmem>>, %arg5: memref<1x32xf32, #tpu.memory_space<vmem>>, %arg6: memref<1x32x96xbf16, #tpu.memory_space<vmem>>, %arg7: memref<1x1x96xf32, #tpu.memory_space<vmem>>, %arg8: memref<1x32x32xbf16, #tpu.memory_space<vmem>>, %arg9: memref<1x1x32xf32, #tpu.memory_space<vmem>>, %arg10: memref<1x1x32xf32, #tpu.memory_space<vmem>>, %arg11: memref<1x1x32xf32, #tpu.memory_space<vmem>>, %arg12: memref<1x32x64xbf16, #tpu.memory_space<vmem>>, %arg13: memref<1x1x64xf32, #tpu.memory_space<vmem>>, %arg14: memref<1x64x32xbf16, #tpu.memory_space<vmem>>, %arg15: memref<1x1x32xf32, #tpu.memory_space<vmem>>, %arg16: memref<1x1x32xf32, #tpu.memory_space<vmem>>, %arg17: memref<1x1x32xf32, #tpu.memory_space<vmem>>, %arg18: memref<1x8x32xf32, #tpu.memory_space<vmem>>, %arg19: memref<8x32xbf16, #tpu.memory_space<vmem>>) attributes {dimension_semantics = [#tpu.dimension_semantics<parallel>, #tpu.dimension_semantics<arbitrary>], iteration_bounds = array<i64: 2, 2>, scalar_prefetch = 0 : i64, scratch_operands = 1 : i64, tpu.core_type = #tpu.core_type<tc>, window_params = [{transform_indices = @transform_0, window_bounds = array<i64: 1, 8, 32>}, {transform_indices = @transform_1, window_bounds = array<i64: 1, 1, 8>}, {pipeline_mode = #tpu.pipeline_mode<synchronous>, transform_indices = @transform_2, window_bounds = array<i64: 1, 32>}, {pipeline_mode = #tpu.pipeline_mode<synchronous>, transform_indices = @transform_3, window_bounds = array<i64: 1, 32>}, {transform_indices = @transform_4, window_bounds = array<i64: 1, 32, 96>}, {transform_indices = @transform_5, window_bounds = array<i64: 1, 1, 96>}, {transform_indices = @transform_6, window_bounds = array<i64: 1, 32, 32>}, {transform_indices = @transform_7, window_bounds = array<i64: 1, 1, 32>}, {transform_indices = @transform_8, window_bounds = array<i64: 1, 1, 32>}, {transform_indices = @transform_9, window_bounds = array<i64: 1, 1, 32>}, {transform_indices = @transform_10, window_bounds = array<i64: 1, 32, 64>}, {transform_indices = @transform_11, window_bounds = array<i64: 1, 1, 64>}, {transform_indices = @transform_12, window_bounds = array<i64: 1, 64, 32>}, {transform_indices = @transform_13, window_bounds = array<i64: 1, 1, 32>}, {transform_indices = @transform_14, window_bounds = array<i64: 1, 1, 32>}, {transform_indices = @transform_15, window_bounds = array<i64: 1, 1, 32>}, {transform_indices = @transform_16, window_bounds = array<i64: 1, 8, 32>}]} {
    %c0_i32 = arith.constant 0 : i32
    %0 = arith.cmpi eq, %arg1, %c0_i32 : i32
    %1 = arith.extui %0 : i1 to i32
    %c0_i32_0 = arith.constant 0 : i32
    %2 = arith.cmpi ne, %1, %c0_i32_0 : i32
    scf.if %2 {
      %c0_74 = arith.constant 0 : index
      %c0_75 = arith.constant 0 : index
      %c0_76 = arith.constant 0 : index
      %167 = vector.load %arg2[%c0_74, %c0_75, %c0_76] : memref<1x8x32xf32, #tpu.memory_space<vmem>>, vector<1x8x32xf32>
      %168 = vector.shape_cast %167 : vector<1x8x32xf32> to vector<8x32xf32>
      %c0_77 = arith.constant 0 : index
      %c0_78 = arith.constant 0 : index
      %169 = vector.load %arg4[%c0_77, %c0_78] : memref<1x32xf32, #tpu.memory_space<vmem>>, vector<1x32xf32>
      %c0_79 = arith.constant 0 : index
      %c0_80 = arith.constant 0 : index
      %170 = vector.load %arg5[%c0_79, %c0_80] : memref<1x32xf32, #tpu.memory_space<vmem>>, vector<1x32xf32>
      %cst_81 = arith.constant dense<0.000000e+00> : vector<8xf32>
      %171 = vector.multi_reduction <add>, %168, %cst_81 [1] : vector<8x32xf32> to vector<8xf32>
      %172 = vector.shape_cast %171 : vector<8xf32> to vector<8x1xf32>
      %cst_82 = arith.constant 3.200000e+01 : f32
      %173 = vector.broadcast %cst_82 : f32 to vector<8x1xf32>
      %174 = arith.divf %172, %173 : vector<8x1xf32>
      %175 = vector.broadcast %174 : vector<8x1xf32> to vector<8x32xf32>
      %176 = arith.subf %168, %175 : vector<8x32xf32>
      %177 = arith.mulf %176, %176 : vector<8x32xf32>
      %cst_83 = arith.constant dense<0.000000e+00> : vector<8xf32>
      %178 = vector.multi_reduction <add>, %177, %cst_83 [1] : vector<8x32xf32> to vector<8xf32>
      %179 = vector.shape_cast %178 : vector<8xf32> to vector<8x1xf32>
      %cst_84 = arith.constant 3.200000e+01 : f32
      %180 = vector.broadcast %cst_84 : f32 to vector<8x1xf32>
      %181 = arith.divf %179, %180 : vector<8x1xf32>
      %cst_85 = arith.constant 9.99999974E-6 : f32
      %182 = vector.broadcast %cst_85 : f32 to vector<8x1xf32>
      %183 = arith.addf %181, %182 : vector<8x1xf32>
      %184 = math.rsqrt %183 : vector<8x1xf32>
      %185 = vector.broadcast %184 : vector<8x1xf32> to vector<8x32xf32>
      %186 = arith.mulf %176, %185 : vector<8x32xf32>
      %187 = vector.broadcast %169 : vector<1x32xf32> to vector<8x32xf32>
      %188 = arith.mulf %186, %187 : vector<8x32xf32>
      %189 = vector.broadcast %170 : vector<1x32xf32> to vector<8x32xf32>
      %190 = arith.addf %188, %189 : vector<8x32xf32>
      %c0_86 = arith.constant 0 : index
      %c0_87 = arith.constant 0 : index
      %c0_88 = arith.constant 0 : index
      %191 = vector.load %arg18[%c0_86, %c0_87, %c0_88] : memref<1x8x32xf32, #tpu.memory_space<vmem>>, vector<1x8x32xf32>
      %192 = vector.shape_cast %191 : vector<1x8x32xf32> to vector<8x32xf32>
      %193 = vector.shape_cast %190 : vector<8x32xf32> to vector<1x8x32xf32>
      tpu.vector_store %arg18[%c0_86, %c0_87, %c0_88], %193 {strides = array<i32>} : memref<1x8x32xf32, #tpu.memory_space<vmem>>, vector<1x8x32xf32>,
    } else {
    }
    %c0 = arith.constant 0 : index
    %c0_1 = arith.constant 0 : index
    %c0_2 = arith.constant 0 : index
    %3 = vector.load %arg18[%c0, %c0_1, %c0_2] : memref<1x8x32xf32, #tpu.memory_space<vmem>>, vector<1x8x32xf32>
    %4 = vector.shape_cast %3 : vector<1x8x32xf32> to vector<8x32xf32>
    %c0_3 = arith.constant 0 : index
    %c0_4 = arith.constant 0 : index
    %c0_5 = arith.constant 0 : index
    %5 = vector.load %arg3[%c0_3, %c0_4, %c0_5] : memref<1x1x8xf32, #tpu.memory_space<vmem>>, vector<1x1x8xf32>
    %c0_6 = arith.constant 0 : index
    %c0_7 = arith.constant 0 : index
    %c0_8 = arith.constant 0 : index
    %6 = vector.load %arg6[%c0_6, %c0_7, %c0_8] : memref<1x32x96xbf16, #tpu.memory_space<vmem>>, vector<1x32x96xbf16>
    %7 = vector.shape_cast %6 : vector<1x32x96xbf16> to vector<32x96xbf16>
    %8 = arith.truncf %4 : vector<8x32xf32> to vector<8x32xbf16>
    %cst = arith.constant dense<0.000000e+00> : vector<8x96xf32>
    %9 = tpu.matmul %8, %7, %cst {dimension_numbers = #tpu.dot_dimension_numbers<[1], [0], [0], [1], [0, 0, 1, 1], [], []>} : vector<8x32xbf16>, vector<32x96xbf16>, vector<8x96xf32> -> vector<8x96xf32>
    %c0_9 = arith.constant 0 : index
    %c0_10 = arith.constant 0 : index
    %c0_11 = arith.constant 0 : index
    %10 = vector.load %arg7[%c0_9, %c0_10, %c0_11] : memref<1x1x96xf32, #tpu.memory_space<vmem>>, vector<1x1x96xf32>
    %11 = vector.shape_cast %10 : vector<1x1x96xf32> to vector<1x96xf32>
    %12 = vector.broadcast %11 : vector<1x96xf32> to vector<8x96xf32>
    %13 = arith.addf %9, %12 : vector<8x96xf32>
    %14 = arith.truncf %13 : vector<8x96xf32> to vector<8x96xbf16>
    %15 = vector.extract_strided_slice %14 {offsets = [0, 0], sizes = [8, 32], strides = [1, 1]} : vector<8x96xbf16> to vector<8x32xbf16>
    %16 = vector.extract_strided_slice %14 {offsets = [0, 32], sizes = [8, 32], strides = [1, 1]} : vector<8x96xbf16> to vector<8x32xbf16>
    %17 = vector.extract_strided_slice %14 {offsets = [0, 64], sizes = [8, 32], strides = [1, 1]} : vector<8x96xbf16> to vector<8x32xbf16>
    %18 = vector.extract_strided_slice %15 {offsets = [0, 0], sizes = [8, 8], strides = [1, 1]} : vector<8x32xbf16> to vector<8x8xbf16>
    %19 = vector.extract_strided_slice %15 {offsets = [0, 8], sizes = [8, 8], strides = [1, 1]} : vector<8x32xbf16> to vector<8x8xbf16>
    %20 = vector.extract_strided_slice %15 {offsets = [0, 16], sizes = [8, 8], strides = [1, 1]} : vector<8x32xbf16> to vector<8x8xbf16>
    %21 = vector.extract_strided_slice %15 {offsets = [0, 24], sizes = [8, 8], strides = [1, 1]} : vector<8x32xbf16> to vector<8x8xbf16>
    %22 = vector.shape_cast %18 : vector<8x8xbf16> to vector<1x8x8xbf16>
    %23 = vector.shape_cast %19 : vector<8x8xbf16> to vector<1x8x8xbf16>
    %24 = vector.shape_cast %20 : vector<8x8xbf16> to vector<1x8x8xbf16>
    %25 = vector.shape_cast %21 : vector<8x8xbf16> to vector<1x8x8xbf16>
    %26 = tpu.concatenate %22, %23, %24, %25 in 0 : vector<1x8x8xbf16>, vector<1x8x8xbf16>, vector<1x8x8xbf16>, vector<1x8x8xbf16> -> vector<4x8x8xbf16>
    %27 = vector.extract_strided_slice %16 {offsets = [0, 0], sizes = [8, 8], strides = [1, 1]} : vector<8x32xbf16> to vector<8x8xbf16>
    %28 = vector.extract_strided_slice %16 {offsets = [0, 8], sizes = [8, 8], strides = [1, 1]} : vector<8x32xbf16> to vector<8x8xbf16>
    %29 = vector.extract_strided_slice %16 {offsets = [0, 16], sizes = [8, 8], strides = [1, 1]} : vector<8x32xbf16> to vector<8x8xbf16>
    %30 = vector.extract_strided_slice %16 {offsets = [0, 24], sizes = [8, 8], strides = [1, 1]} : vector<8x32xbf16> to vector<8x8xbf16>
    %31 = vector.shape_cast %27 : vector<8x8xbf16> to vector<1x8x8xbf16>
    %32 = vector.shape_cast %28 : vector<8x8xbf16> to vector<1x8x8xbf16>
    %33 = vector.shape_cast %29 : vector<8x8xbf16> to vector<1x8x8xbf16>
    %34 = vector.shape_cast %30 : vector<8x8xbf16> to vector<1x8x8xbf16>
    %35 = tpu.concatenate %31, %32, %33, %34 in 0 : vector<1x8x8xbf16>, vector<1x8x8xbf16>, vector<1x8x8xbf16>, vector<1x8x8xbf16> -> vector<4x8x8xbf16>
    %36 = vector.extract_strided_slice %17 {offsets = [0, 0], sizes = [8, 8], strides = [1, 1]} : vector<8x32xbf16> to vector<8x8xbf16>
    %37 = vector.extract_strided_slice %17 {offsets = [0, 8], sizes = [8, 8], strides = [1, 1]} : vector<8x32xbf16> to vector<8x8xbf16>
    %38 = vector.extract_strided_slice %17 {offsets = [0, 16], sizes = [8, 8], strides = [1, 1]} : vector<8x32xbf16> to vector<8x8xbf16>
    %39 = vector.extract_strided_slice %17 {offsets = [0, 24], sizes = [8, 8], strides = [1, 1]} : vector<8x32xbf16> to vector<8x8xbf16>
    %40 = vector.shape_cast %36 : vector<8x8xbf16> to vector<1x8x8xbf16>
    %41 = vector.shape_cast %37 : vector<8x8xbf16> to vector<1x8x8xbf16>
    %42 = vector.shape_cast %38 : vector<8x8xbf16> to vector<1x8x8xbf16>
    %43 = vector.shape_cast %39 : vector<8x8xbf16> to vector<1x8x8xbf16>
    %44 = tpu.concatenate %40, %41, %42, %43 in 0 : vector<1x8x8xbf16>, vector<1x8x8xbf16>, vector<1x8x8xbf16>, vector<1x8x8xbf16> -> vector<4x8x8xbf16>
    "tpu.trace_start"() <{level = 10 : i32, message = "hqd,hkd->hqk"}> : () -> ()
    %cst_12 = arith.constant dense<0.000000e+00> : vector<4x8x8xf32>
    %45 = tpu.matmul %26, %35, %cst_12 {dimension_numbers = #tpu.dot_dimension_numbers<[2], [2], [1], [1], [0, 0, 0, 1, 1, 1], [0], [0]>} : vector<4x8x8xbf16>, vector<4x8x8xbf16>, vector<4x8x8xf32> -> vector<4x8x8xf32>
    "tpu.trace_stop"() : () -> ()
    %46 = vector.broadcast %5 : vector<1x1x8xf32> to vector<4x8x8xf32>
    %47 = arith.addf %45, %46 : vector<4x8x8xf32>
    %cst_13 = arith.constant dense<0xFF800000> : vector<4x8xf32>
    %48 = vector.multi_reduction <maximumf>, %47, %cst_13 [2] : vector<4x8x8xf32> to vector<4x8xf32>
    %49 = vector.shape_cast %48 : vector<4x8xf32> to vector<4x8x1xf32>
    %50 = vector.broadcast %49 : vector<4x8x1xf32> to vector<4x8x8xf32>
    %51 = arith.subf %47, %50 : vector<4x8x8xf32>
    %52 = math.exp %51 : vector<4x8x8xf32>
    %cst_14 = arith.constant dense<0.000000e+00> : vector<4x8xf32>
    %53 = vector.multi_reduction <add>, %52, %cst_14 [2] : vector<4x8x8xf32> to vector<4x8xf32>
    %54 = vector.shape_cast %53 : vector<4x8xf32> to vector<4x8x1xf32>
    %55 = tpu.reciprocal %54 {approx = true} : vector<4x8x1xf32> -> vector<4x8x1xf32>
    %56 = vector.broadcast %55 : vector<4x8x1xf32> to vector<4x8x8xf32>
    %57 = arith.mulf %52, %56 : vector<4x8x8xf32>
    %58 = arith.truncf %57 : vector<4x8x8xf32> to vector<4x8x8xbf16>
    "tpu.trace_start"() <{level = 10 : i32, message = "hqk,hkd->hqd"}> : () -> ()
    %cst_15 = arith.constant dense<0.000000e+00> : vector<4x8x8xf32>
    %59 = tpu.matmul %58, %44, %cst_15 {dimension_numbers = #tpu.dot_dimension_numbers<[2], [1], [1], [2], [0, 0, 0, 1, 1, 2], [0], [0]>} : vector<4x8x8xbf16>, vector<4x8x8xbf16>, vector<4x8x8xf32> -> vector<4x8x8xf32>
    "tpu.trace_stop"() : () -> ()
    %60 = vector.extract_strided_slice %59 {offsets = [0, 0, 0], sizes = [1, 8, 8], strides = [1, 1, 1]} : vector<4x8x8xf32> to vector<1x8x8xf32>
    %61 = vector.shape_cast %60 : vector<1x8x8xf32> to vector<8x8xf32>
    %62 = arith.truncf %61 : vector<8x8xf32> to vector<8x8xbf16>
    %c0_16 = arith.constant 0 : index
    %c0_17 = arith.constant 0 : index
    %63 = vector.load %arg19[%c0_16, %c0_17] : memref<8x32xbf16, #tpu.memory_space<vmem>>, vector<8x8xbf16>
    tpu.vector_store %arg19[%c0_16, %c0_17], %62 {strides = array<i32>} : memref<8x32xbf16, #tpu.memory_space<vmem>>, vector<8x8xbf16>,
    %64 = vector.extract_strided_slice %59 {offsets = [1, 0, 0], sizes = [1, 8, 8], strides = [1, 1, 1]} : vector<4x8x8xf32> to vector<1x8x8xf32>
    %65 = vector.shape_cast %64 : vector<1x8x8xf32> to vector<8x8xf32>
    %66 = arith.truncf %65 : vector<8x8xf32> to vector<8x8xbf16>
    %c0_18 = arith.constant 0 : index
    %c8 = arith.constant 8 : index
    %67 = vector.load %arg19[%c0_18, %c8] : memref<8x32xbf16, #tpu.memory_space<vmem>>, vector<8x8xbf16>
    tpu.vector_store %arg19[%c0_18, %c8], %66 {strides = array<i32>} : memref<8x32xbf16, #tpu.memory_space<vmem>>, vector<8x8xbf16>,
    %68 = vector.extract_strided_slice %59 {offsets = [2, 0, 0], sizes = [1, 8, 8], strides = [1, 1, 1]} : vector<4x8x8xf32> to vector<1x8x8xf32>
    %69 = vector.shape_cast %68 : vector<1x8x8xf32> to vector<8x8xf32>
    %70 = arith.truncf %69 : vector<8x8xf32> to vector<8x8xbf16>
    %c0_19 = arith.constant 0 : index
    %c16 = arith.constant 16 : index
    %71 = vector.load %arg19[%c0_19, %c16] : memref<8x32xbf16, #tpu.memory_space<vmem>>, vector<8x8xbf16>
    tpu.vector_store %arg19[%c0_19, %c16], %70 {strides = array<i32>} : memref<8x32xbf16, #tpu.memory_space<vmem>>, vector<8x8xbf16>,
    %72 = vector.extract_strided_slice %59 {offsets = [3, 0, 0], sizes = [1, 8, 8], strides = [1, 1, 1]} : vector<4x8x8xf32> to vector<1x8x8xf32>
    %73 = vector.shape_cast %72 : vector<1x8x8xf32> to vector<8x8xf32>
    %74 = arith.truncf %73 : vector<8x8xf32> to vector<8x8xbf16>
    %c0_20 = arith.constant 0 : index
    %c24 = arith.constant 24 : index
    %75 = vector.load %arg19[%c0_20, %c24] : memref<8x32xbf16, #tpu.memory_space<vmem>>, vector<8x8xbf16>
    tpu.vector_store %arg19[%c0_20, %c24], %74 {strides = array<i32>} : memref<8x32xbf16, #tpu.memory_space<vmem>>, vector<8x8xbf16>,
    %c0_21 = arith.constant 0 : index
    %c0_22 = arith.constant 0 : index
    %76 = vector.load %arg19[%c0_21, %c0_22] : memref<8x32xbf16, #tpu.memory_space<vmem>>, vector<8x32xbf16>
    %c0_23 = arith.constant 0 : index
    %c0_24 = arith.constant 0 : index
    %c0_25 = arith.constant 0 : index
    %77 = vector.load %arg8[%c0_23, %c0_24, %c0_25] : memref<1x32x32xbf16, #tpu.memory_space<vmem>>, vector<1x32x32xbf16>
    %78 = vector.shape_cast %77 : vector<1x32x32xbf16> to vector<32x32xbf16>
    %cst_26 = arith.constant dense<0.000000e+00> : vector<8x32xf32>
    %79 = tpu.matmul %76, %78, %cst_26 {dimension_numbers = #tpu.dot_dimension_numbers<[1], [0], [0], [1], [0, 0, 1, 1], [], []>} : vector<8x32xbf16>, vector<32x32xbf16>, vector<8x32xf32> -> vector<8x32xf32>
    %c0_27 = arith.constant 0 : index
    %c0_28 = arith.constant 0 : index
    %c0_29 = arith.constant 0 : index
    %80 = vector.load %arg9[%c0_27, %c0_28, %c0_29] : memref<1x1x32xf32, #tpu.memory_space<vmem>>, vector<1x1x32xf32>
    %81 = vector.shape_cast %80 : vector<1x1x32xf32> to vector<1x32xf32>
    %82 = vector.broadcast %81 : vector<1x32xf32> to vector<8x32xf32>
    %83 = arith.addf %79, %82 : vector<8x32xf32>
    %84 = arith.addf %4, %83 : vector<8x32xf32>
    %c0_30 = arith.constant 0 : index
    %c0_31 = arith.constant 0 : index
    %c0_32 = arith.constant 0 : index
    %85 = vector.load %arg10[%c0_30, %c0_31, %c0_32] : memref<1x1x32xf32, #tpu.memory_space<vmem>>, vector<1x1x32xf32>
    %86 = vector.shape_cast %85 : vector<1x1x32xf32> to vector<1x32xf32>
    %c0_33 = arith.constant 0 : index
    %c0_34 = arith.constant 0 : index
    %c0_35 = arith.constant 0 : index
    %87 = vector.load %arg11[%c0_33, %c0_34, %c0_35] : memref<1x1x32xf32, #tpu.memory_space<vmem>>, vector<1x1x32xf32>
    %88 = vector.shape_cast %87 : vector<1x1x32xf32> to vector<1x32xf32>
    %cst_36 = arith.constant dense<0.000000e+00> : vector<8xf32>
    %89 = vector.multi_reduction <add>, %84, %cst_36 [1] : vector<8x32xf32> to vector<8xf32>
    %90 = vector.shape_cast %89 : vector<8xf32> to vector<8x1xf32>
    %cst_37 = arith.constant 3.200000e+01 : f32
    %91 = vector.broadcast %cst_37 : f32 to vector<8x1xf32>
    %92 = arith.divf %90, %91 : vector<8x1xf32>
    %93 = vector.broadcast %92 : vector<8x1xf32> to vector<8x32xf32>
    %94 = arith.subf %84, %93 : vector<8x32xf32>
    %95 = arith.mulf %94, %94 : vector<8x32xf32>
    %cst_38 = arith.constant dense<0.000000e+00> : vector<8xf32>
    %96 = vector.multi_reduction <add>, %95, %cst_38 [1] : vector<8x32xf32> to vector<8xf32>
    %97 = vector.shape_cast %96 : vector<8xf32> to vector<8x1xf32>
    %cst_39 = arith.constant 3.200000e+01 : f32
    %98 = vector.broadcast %cst_39 : f32 to vector<8x1xf32>
    %99 = arith.divf %97, %98 : vector<8x1xf32>
    %cst_40 = arith.constant 9.99999974E-6 : f32
    %100 = vector.broadcast %cst_40 : f32 to vector<8x1xf32>
    %101 = arith.addf %99, %100 : vector<8x1xf32>
    %102 = math.rsqrt %101 : vector<8x1xf32>
    %103 = vector.broadcast %102 : vector<8x1xf32> to vector<8x32xf32>
    %104 = arith.mulf %94, %103 : vector<8x32xf32>
    %105 = vector.broadcast %86 : vector<1x32xf32> to vector<8x32xf32>
    %106 = arith.mulf %104, %105 : vector<8x32xf32>
    %107 = vector.broadcast %88 : vector<1x32xf32> to vector<8x32xf32>
    %108 = arith.addf %106, %107 : vector<8x32xf32>
    %109 = arith.truncf %108 : vector<8x32xf32> to vector<8x32xbf16>
    %c0_41 = arith.constant 0 : index
    %c0_42 = arith.constant 0 : index
    %c0_43 = arith.constant 0 : index
    %110 = vector.load %arg12[%c0_41, %c0_42, %c0_43] : memref<1x32x64xbf16, #tpu.memory_space<vmem>>, vector<1x32x64xbf16>
    %111 = vector.shape_cast %110 : vector<1x32x64xbf16> to vector<32x64xbf16>
    %cst_44 = arith.constant dense<0.000000e+00> : vector<8x64xf32>
    %112 = tpu.matmul %109, %111, %cst_44 {dimension_numbers = #tpu.dot_dimension_numbers<[1], [0], [0], [1], [0, 0, 1, 1], [], []>} : vector<8x32xbf16>, vector<32x64xbf16>, vector<8x64xf32> -> vector<8x64xf32>
    %c0_45 = arith.constant 0 : index
    %c0_46 = arith.constant 0 : index
    %c0_47 = arith.constant 0 : index
    %113 = vector.load %arg13[%c0_45, %c0_46, %c0_47] : memref<1x1x64xf32, #tpu.memory_space<vmem>>, vector<1x1x64xf32>
    %114 = vector.shape_cast %113 : vector<1x1x64xf32> to vector<1x64xf32>
    %115 = vector.broadcast %114 : vector<1x64xf32> to vector<8x64xf32>
    %116 = arith.addf %112, %115 : vector<8x64xf32>
    %cst_48 = arith.constant 5.000000e-01 : f32
    %117 = vector.broadcast %cst_48 : f32 to vector<8x64xf32>
    %118 = arith.mulf %117, %116 : vector<8x64xf32>
    %cst_49 = arith.constant 0.797884583 : f32
    %119 = vector.broadcast %cst_49 : f32 to vector<8x64xf32>
    %120 = arith.mulf %119, %116 : vector<8x64xf32>
    %cst_50 = arith.constant 4.471500e-02 : f32
    %121 = vector.broadcast %cst_50 : f32 to vector<8x64xf32>
    %122 = arith.mulf %121, %116 : vector<8x64xf32>
    %123 = arith.mulf %122, %116 : vector<8x64xf32>
    %cst_51 = arith.constant 1.000000e+00 : f32
    %124 = vector.broadcast %cst_51 : f32 to vector<8x64xf32>
    %125 = arith.addf %124, %123 : vector<8x64xf32>
    %126 = arith.mulf %120, %125 : vector<8x64xf32>
    %127 = math.tanh %126 : vector<8x64xf32>
    %cst_52 = arith.constant 1.000000e+00 : f32
    %128 = vector.broadcast %cst_52 : f32 to vector<8x64xf32>
    %129 = arith.addf %128, %127 : vector<8x64xf32>
    %130 = arith.mulf %118, %129 : vector<8x64xf32>
    %131 = arith.truncf %130 : vector<8x64xf32> to vector<8x64xbf16>
    %c0_53 = arith.constant 0 : index
    %c0_54 = arith.constant 0 : index
    %c0_55 = arith.constant 0 : index
    %132 = vector.load %arg14[%c0_53, %c0_54, %c0_55] : memref<1x64x32xbf16, #tpu.memory_space<vmem>>, vector<1x64x32xbf16>
    %133 = vector.shape_cast %132 : vector<1x64x32xbf16> to vector<64x32xbf16>
    %cst_56 = arith.constant dense<0.000000e+00> : vector<8x32xf32>
    %134 = tpu.matmul %131, %133, %cst_56 {dimension_numbers = #tpu.dot_dimension_numbers<[1], [0], [0], [1], [0, 0, 1, 1], [], []>} : vector<8x64xbf16>, vector<64x32xbf16>, vector<8x32xf32> -> vector<8x32xf32>
    %c0_57 = arith.constant 0 : index
    %c0_58 = arith.constant 0 : index
    %c0_59 = arith.constant 0 : index
    %135 = vector.load %arg15[%c0_57, %c0_58, %c0_59] : memref<1x1x32xf32, #tpu.memory_space<vmem>>, vector<1x1x32xf32>
    %136 = vector.shape_cast %135 : vector<1x1x32xf32> to vector<1x32xf32>
    %137 = vector.broadcast %136 : vector<1x32xf32> to vector<8x32xf32>
    %138 = arith.addf %134, %137 : vector<8x32xf32>
    %139 = arith.addf %108, %138 : vector<8x32xf32>
    %c0_60 = arith.constant 0 : index
    %c0_61 = arith.constant 0 : index
    %c0_62 = arith.constant 0 : index
    %140 = vector.load %arg16[%c0_60, %c0_61, %c0_62] : memref<1x1x32xf32, #tpu.memory_space<vmem>>, vector<1x1x32xf32>
    %141 = vector.shape_cast %140 : vector<1x1x32xf32> to vector<1x32xf32>
    %c0_63 = arith.constant 0 : index
    %c0_64 = arith.constant 0 : index
    %c0_65 = arith.constant 0 : index
    %142 = vector.load %arg17[%c0_63, %c0_64, %c0_65] : memref<1x1x32xf32, #tpu.memory_space<vmem>>, vector<1x1x32xf32>
    %143 = vector.shape_cast %142 : vector<1x1x32xf32> to vector<1x32xf32>
    %cst_66 = arith.constant dense<0.000000e+00> : vector<8xf32>
    %144 = vector.multi_reduction <add>, %139, %cst_66 [1] : vector<8x32xf32> to vector<8xf32>
    %145 = vector.shape_cast %144 : vector<8xf32> to vector<8x1xf32>
    %cst_67 = arith.constant 3.200000e+01 : f32
    %146 = vector.broadcast %cst_67 : f32 to vector<8x1xf32>
    %147 = arith.divf %145, %146 : vector<8x1xf32>
    %148 = vector.broadcast %147 : vector<8x1xf32> to vector<8x32xf32>
    %149 = arith.subf %139, %148 : vector<8x32xf32>
    %150 = arith.mulf %149, %149 : vector<8x32xf32>
    %cst_68 = arith.constant dense<0.000000e+00> : vector<8xf32>
    %151 = vector.multi_reduction <add>, %150, %cst_68 [1] : vector<8x32xf32> to vector<8xf32>
    %152 = vector.shape_cast %151 : vector<8xf32> to vector<8x1xf32>
    %cst_69 = arith.constant 3.200000e+01 : f32
    %153 = vector.broadcast %cst_69 : f32 to vector<8x1xf32>
    %154 = arith.divf %152, %153 : vector<8x1xf32>
    %cst_70 = arith.constant 9.99999974E-6 : f32
    %155 = vector.broadcast %cst_70 : f32 to vector<8x1xf32>
    %156 = arith.addf %154, %155 : vector<8x1xf32>
    %157 = math.rsqrt %156 : vector<8x1xf32>
    %158 = vector.broadcast %157 : vector<8x1xf32> to vector<8x32xf32>
    %159 = arith.mulf %149, %158 : vector<8x32xf32>
    %160 = vector.broadcast %141 : vector<1x32xf32> to vector<8x32xf32>
    %161 = arith.mulf %159, %160 : vector<8x32xf32>
    %162 = vector.broadcast %143 : vector<1x32xf32> to vector<8x32xf32>
    %163 = arith.addf %161, %162 : vector<8x32xf32>
    %c0_71 = arith.constant 0 : index
    %c0_72 = arith.constant 0 : index
    %c0_73 = arith.constant 0 : index
    %164 = vector.load %arg18[%c0_71, %c0_72, %c0_73] : memref<1x8x32xf32, #tpu.memory_space<vmem>>, vector<1x8x32xf32>
    %165 = vector.shape_cast %164 : vector<1x8x32xf32> to vector<8x32xf32>
    %166 = vector.shape_cast %163 : vector<8x32xf32> to vector<1x8x32xf32>
    tpu.vector_store %arg18[%c0_71, %c0_72, %c0_73], %166 {strides = array<i32>} : memref<1x8x32xf32, #tpu.memory_space<vmem>>, vector<1x8x32xf32>,
    return
  }
  func.func @transform_0(%arg0: i32, %arg1: i32) -> (i32, i32, i32) {
    %c0_i32 = arith.constant 0 : i32
    %c0_i32_0 = arith.constant 0 : i32
    %c0_i32_1 = arith.constant 0 : i32
    return %arg0, %c0_i32, %c0_i32_0 : i32, i32, i32
  }
  func.func @transform_1(%arg0: i32, %arg1: i32) -> (i32, i32, i32) {
    %c0_i32 = arith.constant 0 : i32
    %c0_i32_0 = arith.constant 0 : i32
    %c0_i32_1 = arith.constant 0 : i32
    return %arg0, %c0_i32, %c0_i32_0 : i32, i32, i32
  }
  func.func @transform_2(%arg0: i32, %arg1: i32) -> (i32, i32) {
    %c0_i32 = arith.constant 0 : i32
    %c0_i32_0 = arith.constant 0 : i32
    %c0_i32_1 = arith.constant 0 : i32
    return %c0_i32, %c0_i32_0 : i32, i32
  }
  func.func @transform_3(%arg0: i32, %arg1: i32) -> (i32, i32) {
    %c0_i32 = arith.constant 0 : i32
    %c0_i32_0 = arith.constant 0 : i32
    %c0_i32_1 = arith.constant 0 : i32
    return %c0_i32, %c0_i32_0 : i32, i32
  }
  func.func @transform_4(%arg0: i32, %arg1: i32) -> (i32, i32, i32) {
    %c0_i32 = arith.constant 0 : i32
    %c0_i32_0 = arith.constant 0 : i32
    %c0_i32_1 = arith.constant 0 : i32
    return %arg1, %c0_i32, %c0_i32_0 : i32, i32, i32
  }
  func.func @transform_5(%arg0: i32, %arg1: i32) -> (i32, i32, i32) {
    %c0_i32 = arith.constant 0 : i32
    %c0_i32_0 = arith.constant 0 : i32
    %c0_i32_1 = arith.constant 0 : i32
    return %arg1, %c0_i32, %c0_i32_0 : i32, i32, i32
  }
  func.func @transform_6(%arg0: i32, %arg1: i32) -> (i32, i32, i32) {
    %c0_i32 = arith.constant 0 : i32
    %c0_i32_0 = arith.constant 0 : i32
    %c0_i32_1 = arith.constant 0 : i32
    return %arg1, %c0_i32, %c0_i32_0 : i32, i32, i32
  }
  func.func @transform_7(%arg0: i32, %arg1: i32) -> (i32, i32, i32) {
    %c0_i32 = arith.constant 0 : i32
    %c0_i32_0 = arith.constant 0 : i32
    %c0_i32_1 = arith.constant 0 : i32
    return %arg1, %c0_i32, %c0_i32_0 : i32, i32, i32
  }
  func.func @transform_8(%arg0: i32, %arg1: i32) -> (i32, i32, i32) {
    %c0_i32 = arith.constant 0 : i32
    %c0_i32_0 = arith.constant 0 : i32
    %c0_i32_1 = arith.constant 0 : i32
    return %arg1, %c0_i32, %c0_i32_0 : i32, i32, i32
  }
  func.func @transform_9(%arg0: i32, %arg1: i32) -> (i32, i32, i32) {
    %c0_i32 = arith.constant 0 : i32
    %c0_i32_0 = arith.constant 0 : i32
    %c0_i32_1 = arith.constant 0 : i32
    return %arg1, %c0_i32, %c0_i32_0 : i32, i32, i32
  }
  func.func @transform_10(%arg0: i32, %arg1: i32) -> (i32, i32, i32) {
    %c0_i32 = arith.constant 0 : i32
    %c0_i32_0 = arith.constant 0 : i32
    %c0_i32_1 = arith.constant 0 : i32
    return %arg1, %c0_i32, %c0_i32_0 : i32, i32, i32
  }
  func.func @transform_11(%arg0: i32, %arg1: i32) -> (i32, i32, i32) {
    %c0_i32 = arith.constant 0 : i32
    %c0_i32_0 = arith.constant 0 : i32
    %c0_i32_1 = arith.constant 0 : i32
    return %arg1, %c0_i32, %c0_i32_0 : i32, i32, i32
  }
  func.func @transform_12(%arg0: i32, %arg1: i32) -> (i32, i32, i32) {
    %c0_i32 = arith.constant 0 : i32
    %c0_i32_0 = arith.constant 0 : i32
    %c0_i32_1 = arith.constant 0 : i32
    return %arg1, %c0_i32, %c0_i32_0 : i32, i32, i32
  }
  func.func @transform_13(%arg0: i32, %arg1: i32) -> (i32, i32, i32) {
    %c0_i32 = arith.constant 0 : i32
    %c0_i32_0 = arith.constant 0 : i32
    %c0_i32_1 = arith.constant 0 : i32
    return %arg1, %c0_i32, %c0_i32_0 : i32, i32, i32
  }
  func.func @transform_14(%arg0: i32, %arg1: i32) -> (i32, i32, i32) {
    %c0_i32 = arith.constant 0 : i32
    %c0_i32_0 = arith.constant 0 : i32
    %c0_i32_1 = arith.constant 0 : i32
    return %arg1, %c0_i32, %c0_i32_0 : i32, i32, i32
  }
  func.func @transform_15(%arg0: i32, %arg1: i32) -> (i32, i32, i32) {
    %c0_i32 = arith.constant 0 : i32
    %c0_i32_0 = arith.constant 0 : i32
    %c0_i32_1 = arith.constant 0 : i32
    return %arg1, %c0_i32, %c0_i32_0 : i32, i32, i32
  }
  func.func @transform_16(%arg0: i32, %arg1: i32) -> (i32, i32, i32) {
    %c0_i32 = arith.constant 0 : i32
    %c0_i32_0 = arith.constant 0 : i32
    %c0_i32_1 = arith.constant 0 : i32
    return %arg0, %c0_i32, %c0_i32_0 : i32, i32, i32
  }
}

</mosaic_0001>

<llo_original>
// kernel: tpu_custom_call.1
$region0: #{tpu_custom_call.1}
  #allocation0 [shape = 'u32[]', space=smem, size = 0x4, offset = 0x4, fixed_abs, tag = 'smem constant byte address 0x4 - core index']
  #allocation1 [shape = 'u32[72,128]{1,0:T(1,128)}', space=vmem, size = 0x9000, scoped, tag = 'internal scratch']
  #allocation2 [shape = 'bf16[8,32]{1,0:T(8,128)(2,1)}', space=vmem, size = 0x800, scoped, tag = 'scratch operand']
  %s0 = inlined_call_operand.hbm [shape: f32[2,8,32], index: 0, kind: input, shape index: {}]
  %s1 = inlined_call_operand.hbm [shape: f32[2,1,8], index: 1, kind: input, shape index: {}]
  %s2 = inlined_call_operand.vmem [shape: f32[1,32], index: 2, kind: input, shape index: {}]
  %s3 = inlined_call_operand.hbm [shape: f32[1,32], index: 3, kind: input, shape index: {}]
  %s4 = inlined_call_operand.vmem [shape: bf16[2,32,96], index: 4, kind: input, shape index: {}]
  %s5 = inlined_call_operand.vmem [shape: f32[2,1,96], index: 5, kind: input, shape index: {}]
  %s6 = inlined_call_operand.vmem [shape: bf16[2,32,32], index: 6, kind: input, shape index: {}]
  %s7 = inlined_call_operand.vmem [shape: f32[2,1,32], index: 7, kind: input, shape index: {}]
  %s8 = inlined_call_operand.vmem [shape: f32[2,1,32], index: 8, kind: input, shape index: {}]
  %s9 = inlined_call_operand.hbm [shape: f32[2,1,32], index: 9, kind: input, shape index: {}]
  %s10 = inlined_call_operand.vmem [shape: bf16[2,32,64], index: 10, kind: input, shape index: {}]
  %s11 = inlined_call_operand.vmem [shape: f32[2,1,64], index: 11, kind: input, shape index: {}]
  %s12 = inlined_call_operand.vmem [shape: bf16[2,64,32], index: 12, kind: input, shape index: {}]
  %s13 = inlined_call_operand.vmem [shape: f32[2,1,32], index: 13, kind: input, shape index: {}]
  %s14 = inlined_call_operand.vmem [shape: f32[2,1,32], index: 14, kind: input, shape index: {}]
  %s15 = inlined_call_operand.hbm [shape: f32[2,1,32], index: 15, kind: input, shape index: {}]
  %s16 = inlined_call_operand.hbm [shape: f32[2,8,32], index: 16, kind: output, shape index: {}]
  %s17 = sld [smem:[#allocation0]]
  $region121: #{tpu_custom_call.1} parent=0
    _
  %s19 = ssub.s32 1, %s17
  %s20 = scalar_select 0, %s19, %s17
  $region1: #{tpu_custom_call.1} parent=0
    #allocation3 [shape = 'u8[8192]{0}', space=vmem, size = 0x2000, scoped, tag = 'input window, operand 0']
    #allocation4 [shape = 's32[2]{0}', space=sflag, size = 0x8, scoped, tag = 'scoped memory for tpu_custom_call.1']
    #allocation5 [shape = 's32[2]{0}', space=sflag, size = 0x8, scoped, tag = 'scoped memory for tpu_custom_call.1']
    #allocation6 [shape = 'u8[1024]{0}', space=vmem, size = 0x400, scoped, tag = 'input window, operand 1']
    #allocation7 [shape = 's32[2]{0}', space=sflag, size = 0x8, scoped, tag = 'scoped memory for tpu_custom_call.1']
    #allocation8 [shape = 'u8[512]{0}', space=vmem, size = 0x400, scoped, tag = 'input window, operand 3, single buffered']
    #allocation9 [shape = 'u8[1024]{0}', space=vmem, size = 0x400, scoped, tag = 'input window, operand 9']
    #allocation10 [shape = 's32[2]{0}', space=sflag, size = 0x8, scoped, tag = 'scoped memory for tpu_custom_call.1']
    #allocation11 [shape = 'u8[1024]{0}', space=vmem, size = 0x400, scoped, tag = 'input window, operand 15']
    #allocation12 [shape = 'u8[8192]{0}', space=vmem, size = 0x2000, scoped, tag = 'output window, operand 0']
    %21 = vsyncpa [#allocation4], 0
    %s22 = scalar_lea.sflag [#allocation4], 1
    %23 = vsyncpa %s22, 0
    %24 = vsyncpa [#allocation7], 0
    %s25 = scalar_lea.sflag [#allocation7], 1
    %26 = vsyncpa %s25, 0
    %27 = vsyncpa [#allocation10], 0
    %s28 = scalar_lea.sflag [#allocation10], 1
    %29 = vsyncpa %s28, 0
    %30 = vsyncpa [#allocation5], 0
    %s31 = scalar_lea.sflag [#allocation5], 1
    %32 = vsyncpa %s31, 0
    loop: start=0, step=1, limit=6
    $region2: #{tpu_custom_call.1} parent=1 // loop_pre_header
      _
    $region3: #{tpu_custom_call.1} parent=1 // loop_header
      %s34 = sphi 0, %s38
      %p35 = scmp.ge.s32.totalorder %s34, 6
      %s41 = sphi 0, %s53
      %s42 = sphi 0, %s49
      %s43 = sphi 0, %s41
      %s44 = sphi 0, %s42
      %s45 = sphi 0, %s43
      %s46 = sphi 0, %s44
      %s56 = sphi 0, %s58
      %s59 = sphi 0, %s56
      %s60 = sphi 0, %s59
      %s76 = sphi 0, %s60
      %s82 = sphi 0, %s84
      %s85 = sphi 0, %s82
      %s86 = sphi 0, %s85
      %s102 = sphi 0, %s86
      %s106 = sphi 0, %s106
      %s108 = sphi 0, %s106
      %s109 = sphi 0, %s108
      %s123 = sphi 0, %s109
      %s127 = sphi 0, %s127
      %s129 = sphi 0, %s127
      %s130 = sphi 0, %s129
      %s144 = sphi 0, %s130
      %s150 = sphi 0, %s152
      %s153 = sphi 0, %s150
      %s154 = sphi 0, %s153
      %s170 = sphi 0, %s154
      %s176 = sphi 0, %s178
      %s179 = sphi 0, %s176
      %s180 = sphi 0, %s179
      %s196 = sphi 0, %s180
      %s202 = sphi 0, %s204
      %s205 = sphi 0, %s202
      %s206 = sphi 0, %s205
      %s222 = sphi 0, %s206
      %s228 = sphi 0, %s230
      %s231 = sphi 0, %s228
      %s232 = sphi 0, %s231
      %s248 = sphi 0, %s232
      %s254 = sphi 0, %s256
      %s257 = sphi 0, %s254
      %s258 = sphi 0, %s257
      %s274 = sphi 0, %s258
      %s280 = sphi 0, %s282
      %s283 = sphi 0, %s280
      %s284 = sphi 0, %s283
      %s300 = sphi 0, %s284
      %s306 = sphi 0, %s308
      %s309 = sphi 0, %s306
      %s310 = sphi 0, %s309
      %s326 = sphi 0, %s310
      %s332 = sphi 0, %s334
      %s335 = sphi 0, %s332
      %s336 = sphi 0, %s335
      %s352 = sphi 0, %s336
      %s358 = sphi 0, %s360
      %s361 = sphi 0, %s358
      %s362 = sphi 0, %s361
      %s378 = sphi 0, %s362
      %s384 = sphi 0, %s386
      %s387 = sphi 0, %s384
      %s388 = sphi 0, %s387
      %s404 = sphi 0, %s388
      %s410 = sphi 0, %s412
      %s413 = sphi 0, %s410
      %s414 = sphi 0, %s413
      %s430 = sphi 0, %s414
      %s436 = sphi 0, %s438
      %s439 = sphi 0, %s436
      %s440 = sphi 0, %s439
      %s456 = sphi 0, %s440
      %s462 = sphi 0, %s464
      %s465 = sphi 0, %s462
      %s466 = sphi 0, %s465
      %s482 = sphi 0, %s466
    $region4: #{tpu_custom_call.1} parent=1 // loop_header_branch
      %37 = sbr.rel (%p35) target = $region8
    $region5: #{tpu_custom_call.1} parent=1 // loop_body
      %s39 = ssub.s32 %s34, 1
      %s40 = ssub.s32 %s34, 2
      %s47 = sadd.s32 1, %s42
      %p48 = scmp.ge.s32.totalorder %s47, 2
      %s49 = scalar_select %p48, 0, %s47
      %s50 = sadd.s32 1, %s41
      %s51 = scalar_select %p48, %s50, %s41
      %p52 = scmp.ge.s32.totalorder %s51, 2
      %s53 = scalar_select %p52, 0, %s51
      %s54 = ssub.s32 %s41, %s53
      %p55 = scmp.eq.s32.totalorder %s54, 0
      %s57 = sadd.s32 %s56, 1
      %s58 = scalar_select %p55, %s56, %s57
      %p61 = pneg %p55
      %p62 = scmp.eq.s32.totalorder %s34, 3
      %p63 = por %p61, %p62
      %p64 = scmp.ne.s32.totalorder %s56, %s59
      %p65 = scmp.eq.s32.totalorder %s34, 0
      %p66 = por %p64, %p65
      %p67 = scmp.ne.s32.totalorder %s56, %s59
      %p68 = scmp.eq.s32.totalorder %s39, 3
      %p69 = por %p67, %p68
      %p70 = scmp.ne.s32.totalorder %s59, %s60
      %p71 = scmp.eq.s32.totalorder %s39, 0
      %p72 = por %p70, %p71
      %p73 = scmp.ne.s32.totalorder %s59, %s60
      %p74 = scmp.eq.s32.totalorder %s40, 3
      %p75 = por %p73, %p74
      %p77 = scmp.ne.s32.totalorder %s60, %s76
      %p78 = scmp.eq.s32.totalorder %s40, 0
      %p79 = por %p77, %p78
      %s80 = ssub.s32 %s41, %s53
      %p81 = scmp.eq.s32.totalorder %s80, 0
      %s83 = sadd.s32 %s82, 1
      %s84 = scalar_select %p81, %s82, %s83
      %p87 = pneg %p81
      %p88 = scmp.eq.s32.totalorder %s34, 3
      %p89 = por %p87, %p88
      %p90 = scmp.ne.s32.totalorder %s82, %s85
      %p91 = scmp.eq.s32.totalorder %s34, 0
      %p92 = por %p90, %p91
      %p93 = scmp.ne.s32.totalorder %s82, %s85
      %p94 = scmp.eq.s32.totalorder %s39, 3
      %p95 = por %p93, %p94
      %p96 = scmp.ne.s32.totalorder %s85, %s86
      %p97 = scmp.eq.s32.totalorder %s39, 0
      %p98 = por %p96, %p97
      %p99 = scmp.ne.s32.totalorder %s85, %s86
      %p100 = scmp.eq.s32.totalorder %s40, 3
      %p101 = por %p99, %p100
      %p103 = scmp.ne.s32.totalorder %s86, %s102
      %p104 = scmp.eq.s32.totalorder %s40, 0
      %p105 = por %p103, %p104
      %s107 = sadd.s32 %s106, 1
      %p110 = scmp.eq.s32.totalorder %s34, 3
      %p111 = scmp.ne.s32.totalorder %s106, %s108
      %p112 = scmp.eq.s32.totalorder %s34, 0
      %p113 = por %p111, %p112
      %p114 = scmp.ne.s32.totalorder %s106, %s108
      %p115 = scmp.eq.s32.totalorder %s39, 3
      %p116 = por %p114, %p115
      %p117 = scmp.ne.s32.totalorder %s108, %s109
      %p118 = scmp.eq.s32.totalorder %s39, 0
      %p119 = por %p117, %p118
      %p120 = scmp.ne.s32.totalorder %s108, %s109
      %p121 = scmp.eq.s32.totalorder %s40, 3
      %p122 = por %p120, %p121
      %p124 = scmp.ne.s32.totalorder %s109, %s123
      %p125 = scmp.eq.s32.totalorder %s40, 0
      %p126 = por %p124, %p125
      %s128 = sadd.s32 %s127, 1
      %p131 = scmp.eq.s32.totalorder %s34, 3
      %p132 = scmp.ne.s32.totalorder %s127, %s129
      %p133 = scmp.eq.s32.totalorder %s34, 0
      %p134 = por %p132, %p133
      %p135 = scmp.ne.s32.totalorder %s127, %s129
      %p136 = scmp.eq.s32.totalorder %s39, 3
      %p137 = por %p135, %p136
      %p138 = scmp.ne.s32.totalorder %s129, %s130
      %p139 = scmp.eq.s32.totalorder %s39, 0
      %p140 = por %p138, %p139
      %p141 = scmp.ne.s32.totalorder %s129, %s130
      %p142 = scmp.eq.s32.totalorder %s40, 3
      %p143 = por %p141, %p142
      %p145 = scmp.ne.s32.totalorder %s130, %s144
      %p146 = scmp.eq.s32.totalorder %s40, 0
      %p147 = por %p145, %p146
      %s148 = ssub.s32 %s42, %s49
      %p149 = scmp.eq.s32.totalorder %s148, 0
      %s151 = sadd.s32 %s150, 1
      %s152 = scalar_select %p149, %s150, %s151
      %p155 = pneg %p149
      %p156 = scmp.eq.s32.totalorder %s34, 3
      %p157 = por %p155, %p156
      %p158 = scmp.ne.s32.totalorder %s150, %s153
      %p159 = scmp.eq.s32.totalorder %s34, 0
      %p160 = por %p158, %p159
      %p161 = scmp.ne.s32.totalorder %s150, %s153
      %p162 = scmp.eq.s32.totalorder %s39, 3
      %p163 = por %p161, %p162
      %p164 = scmp.ne.s32.totalorder %s153, %s154
      %p165 = scmp.eq.s32.totalorder %s39, 0
      %p166 = por %p164, %p165
      %p167 = scmp.ne.s32.totalorder %s153, %s154
      %p168 = scmp.eq.s32.totalorder %s40, 3
      %p169 = por %p167, %p168
      %p171 = scmp.ne.s32.totalorder %s154, %s170
      %p172 = scmp.eq.s32.totalorder %s40, 0
      %p173 = por %p171, %p172
      %s174 = ssub.s32 %s42, %s49
      %p175 = scmp.eq.s32.totalorder %s174, 0
      %s177 = sadd.s32 %s176, 1
      %s178 = scalar_select %p175, %s176, %s177
      %p181 = pneg %p175
      %p182 = scmp.eq.s32.totalorder %s34, 3
      %p183 = por %p181, %p182
      %p184 = scmp.ne.s32.totalorder %s176, %s179
      %p185 = scmp.eq.s32.totalorder %s34, 0
      %p186 = por %p184, %p185
      %p187 = scmp.ne.s32.totalorder %s176, %s179
      %p188 = scmp.eq.s32.totalorder %s39, 3
      %p189 = por %p187, %p188
      %p190 = scmp.ne.s32.totalorder %s179, %s180
      %p191 = scmp.eq.s32.totalorder %s39, 0
      %p192 = por %p190, %p191
      %p193 = scmp.ne.s32.totalorder %s179, %s180
      %p194 = scmp.eq.s32.totalorder %s40, 3
      %p195 = por %p193, %p194
      %p197 = scmp.ne.s32.totalorder %s180, %s196
      %p198 = scmp.eq.s32.totalorder %s40, 0
      %p199 = por %p197, %p198
      %s200 = ssub.s32 %s42, %s49
      %p201 = scmp.eq.s32.totalorder %s200, 0
      %s203 = sadd.s32 %s202, 1
      %s204 = scalar_select %p201, %s202, %s203
      %p207 = pneg %p201
      %p208 = scmp.eq.s32.totalorder %s34, 3
      %p209 = por %p207, %p208
      %p210 = scmp.ne.s32.totalorder %s202, %s205
      %p211 = scmp.eq.s32.totalorder %s34, 0
      %p212 = por %p210, %p211
      %p213 = scmp.ne.s32.totalorder %s202, %s205
      %p214 = scmp.eq.s32.totalorder %s39, 3
      %p215 = por %p213, %p214
      %p216 = scmp.ne.s32.totalorder %s205, %s206
      %p217 = scmp.eq.s32.totalorder %s39, 0
      %p218 = por %p216, %p217
      %p219 = scmp.ne.s32.totalorder %s205, %s206
      %p220 = scmp.eq.s32.totalorder %s40, 3
      %p221 = por %p219, %p220
      %p223 = scmp.ne.s32.totalorder %s206, %s222
      %p224 = scmp.eq.s32.totalorder %s40, 0
      %p225 = por %p223, %p224
      %s226 = ssub.s32 %s42, %s49
      %p227 = scmp.eq.s32.totalorder %s226, 0
      %s229 = sadd.s32 %s228, 1
      %s230 = scalar_select %p227, %s228, %s229
      %p233 = pneg %p227
      %p234 = scmp.eq.s32.totalorder %s34, 3
      %p235 = por %p233, %p234
      %p236 = scmp.ne.s32.totalorder %s228, %s231
      %p237 = scmp.eq.s32.totalorder %s34, 0
      %p238 = por %p236, %p237
      %p239 = scmp.ne.s32.totalorder %s228, %s231
      %p240 = scmp.eq.s32.totalorder %s39, 3
      %p241 = por %p239, %p240
      %p242 = scmp.ne.s32.totalorder %s231, %s232
      %p243 = scmp.eq.s32.totalorder %s39, 0
      %p244 = por %p242, %p243
      %p245 = scmp.ne.s32.totalorder %s231, %s232
      %p246 = scmp.eq.s32.totalorder %s40, 3
      %p247 = por %p245, %p246
      %p249 = scmp.ne.s32.totalorder %s232, %s248
      %p250 = scmp.eq.s32.totalorder %s40, 0
      %p251 = por %p249, %p250
      %s252 = ssub.s32 %s42, %s49
      %p253 = scmp.eq.s32.totalorder %s252, 0
      %s255 = sadd.s32 %s254, 1
      %s256 = scalar_select %p253, %s254, %s255
      %p259 = pneg %p253
      %p260 = scmp.eq.s32.totalorder %s34, 3
      %p261 = por %p259, %p260
      %p262 = scmp.ne.s32.totalorder %s254, %s257
      %p263 = scmp.eq.s32.totalorder %s34, 0
      %p264 = por %p262, %p263
      %p265 = scmp.ne.s32.totalorder %s254, %s257
      %p266 = scmp.eq.s32.totalorder %s39, 3
      %p267 = por %p265, %p266
      %p268 = scmp.ne.s32.totalorder %s257, %s258
      %p269 = scmp.eq.s32.totalorder %s39, 0
      %p270 = por %p268, %p269
      %p271 = scmp.ne.s32.totalorder %s257, %s258
      %p272 = scmp.eq.s32.totalorder %s40, 3
      %p273 = por %p271, %p272
      %p275 = scmp.ne.s32.totalorder %s258, %s274
      %p276 = scmp.eq.s32.totalorder %s40, 0
      %p277 = por %p275, %p276
      %s278 = ssub.s32 %s42, %s49
      %p279 = scmp.eq.s32.totalorder %s278, 0
      %s281 = sadd.s32 %s280, 1
      %s282 = scalar_select %p279, %s280, %s281
      %p285 = pneg %p279
      %p286 = scmp.eq.s32.totalorder %s34, 3
      %p287 = por %p285, %p286
      %p288 = scmp.ne.s32.totalorder %s280, %s283
      %p289 = scmp.eq.s32.totalorder %s34, 0
      %p290 = por %p288, %p289
      %p291 = scmp.ne.s32.totalorder %s280, %s283
      %p292 = scmp.eq.s32.totalorder %s39, 3
      %p293 = por %p291, %p292
      %p294 = scmp.ne.s32.totalorder %s283, %s284
      %p295 = scmp.eq.s32.totalorder %s39, 0
      %p296 = por %p294, %p295
      %p297 = scmp.ne.s32.totalorder %s283, %s284
      %p298 = scmp.eq.s32.totalorder %s40, 3
      %p299 = por %p297, %p298
      %p301 = scmp.ne.s32.totalorder %s284, %s300
      %p302 = scmp.eq.s32.totalorder %s40, 0
      %p303 = por %p301, %p302
      %s304 = ssub.s32 %s42, %s49
      %p305 = scmp.eq.s32.totalorder %s304, 0
      %s307 = sadd.s32 %s306, 1
      %s308 = scalar_select %p305, %s306, %s307
      %p311 = pneg %p305
      %p312 = scmp.eq.s32.totalorder %s34, 3
      %p313 = por %p311, %p312
      %p314 = scmp.ne.s32.totalorder %s306, %s309
      %p315 = scmp.eq.s32.totalorder %s34, 0
      %p316 = por %p314, %p315
      %p317 = scmp.ne.s32.totalorder %s306, %s309
      %p318 = scmp.eq.s32.totalorder %s39, 3
      %p319 = por %p317, %p318
      %p320 = scmp.ne.s32.totalorder %s309, %s310
      %p321 = scmp.eq.s32.totalorder %s39, 0
      %p322 = por %p320, %p321
      %p323 = scmp.ne.s32.totalorder %s309, %s310
      %p324 = scmp.eq.s32.totalorder %s40, 3
      %p325 = por %p323, %p324
      %p327 = scmp.ne.s32.totalorder %s310, %s326
      %p328 = scmp.eq.s32.totalorder %s40, 0
      %p329 = por %p327, %p328
      %s330 = ssub.s32 %s42, %s49
      %p331 = scmp.eq.s32.totalorder %s330, 0
      %s333 = sadd.s32 %s332, 1
      %s334 = scalar_select %p331, %s332, %s333
      %p337 = pneg %p331
      %p338 = scmp.eq.s32.totalorder %s34, 3
      %p339 = por %p337, %p338
      %p340 = scmp.ne.s32.totalorder %s332, %s335
      %p341 = scmp.eq.s32.totalorder %s34, 0
      %p342 = por %p340, %p341
      %p343 = scmp.ne.s32.totalorder %s332, %s335
      %p344 = scmp.eq.s32.totalorder %s39, 3
      %p345 = por %p343, %p344
      %p346 = scmp.ne.s32.totalorder %s335, %s336
      %p347 = scmp.eq.s32.totalorder %s39, 0
      %p348 = por %p346, %p347
      %p349 = scmp.ne.s32.totalorder %s335, %s336
      %p350 = scmp.eq.s32.totalorder %s40, 3
      %p351 = por %p349, %p350
      %p353 = scmp.ne.s32.totalorder %s336, %s352
      %p354 = scmp.eq.s32.totalorder %s40, 0
      %p355 = por %p353, %p354
      %s356 = ssub.s32 %s42, %s49
      %p357 = scmp.eq.s32.totalorder %s356, 0
      %s359 = sadd.s32 %s358, 1
      %s360 = scalar_select %p357, %s358, %s359
      %p363 = pneg %p357
      %p364 = scmp.eq.s32.totalorder %s34, 3
      %p365 = por %p363, %p364
      %p366 = scmp.ne.s32.totalorder %s358, %s361
      %p367 = scmp.eq.s32.totalorder %s34, 0
      %p368 = por %p366, %p367
      %p369 = scmp.ne.s32.totalorder %s358, %s361
      %p370 = scmp.eq.s32.totalorder %s39, 3
      %p371 = por %p369, %p370
      %p372 = scmp.ne.s32.totalorder %s361, %s362
      %p373 = scmp.eq.s32.totalorder %s39, 0
      %p374 = por %p372, %p373
      %p375 = scmp.ne.s32.totalorder %s361, %s362
      %p376 = scmp.eq.s32.totalorder %s40, 3
      %p377 = por %p375, %p376
      %p379 = scmp.ne.s32.totalorder %s362, %s378
      %p380 = scmp.eq.s32.totalorder %s40, 0
      %p381 = por %p379, %p380
      %s382 = ssub.s32 %s42, %s49
      %p383 = scmp.eq.s32.totalorder %s382, 0
      %s385 = sadd.s32 %s384, 1
      %s386 = scalar_select %p383, %s384, %s385
      %p389 = pneg %p383
      %p390 = scmp.eq.s32.totalorder %s34, 3
      %p391 = por %p389, %p390
      %p392 = scmp.ne.s32.totalorder %s384, %s387
      %p393 = scmp.eq.s32.totalorder %s34, 0
      %p394 = por %p392, %p393
      %p395 = scmp.ne.s32.totalorder %s384, %s387
      %p396 = scmp.eq.s32.totalorder %s39, 3
      %p397 = por %p395, %p396
      %p398 = scmp.ne.s32.totalorder %s387, %s388
      %p399 = scmp.eq.s32.totalorder %s39, 0
      %p400 = por %p398, %p399
      %p401 = scmp.ne.s32.totalorder %s387, %s388
      %p402 = scmp.eq.s32.totalorder %s40, 3
      %p403 = por %p401, %p402
      %p405 = scmp.ne.s32.totalorder %s388, %s404
      %p406 = scmp.eq.s32.totalorder %s40, 0
      %p407 = por %p405, %p406
      %s408 = ssub.s32 %s42, %s49
      %p409 = scmp.eq.s32.totalorder %s408, 0
      %s411 = sadd.s32 %s410, 1
      %s412 = scalar_select %p409, %s410, %s411
      %p415 = pneg %p409
      %p416 = scmp.eq.s32.totalorder %s34, 3
      %p417 = por %p415, %p416
      %p418 = scmp.ne.s32.totalorder %s410, %s413
      %p419 = scmp.eq.s32.totalorder %s34, 0
      %p420 = por %p418, %p419
      %p421 = scmp.ne.s32.totalorder %s410, %s413
      %p422 = scmp.eq.s32.totalorder %s39, 3
      %p423 = por %p421, %p422
      %p424 = scmp.ne.s32.totalorder %s413, %s414
      %p425 = scmp.eq.s32.totalorder %s39, 0
      %p426 = por %p424, %p425
      %p427 = scmp.ne.s32.totalorder %s413, %s414
      %p428 = scmp.eq.s32.totalorder %s40, 3
      %p429 = por %p427, %p428
      %p431 = scmp.ne.s32.totalorder %s414, %s430
      %p432 = scmp.eq.s32.totalorder %s40, 0
      %p433 = por %p431, %p432
      %s434 = ssub.s32 %s42, %s49
      %p435 = scmp.eq.s32.totalorder %s434, 0
      %s437 = sadd.s32 %s436, 1
      %s438 = scalar_select %p435, %s436, %s437
      %p441 = pneg %p435
      %p442 = scmp.eq.s32.totalorder %s34, 3
      %p443 = por %p441, %p442
      %p444 = scmp.ne.s32.totalorder %s436, %s439
      %p445 = scmp.eq.s32.totalorder %s34, 0
      %p446 = por %p444, %p445
      %p447 = scmp.ne.s32.totalorder %s436, %s439
      %p448 = scmp.eq.s32.totalorder %s39, 3
      %p449 = por %p447, %p448
      %p450 = scmp.ne.s32.totalorder %s439, %s440
      %p451 = scmp.eq.s32.totalorder %s39, 0
      %p452 = por %p450, %p451
      %p453 = scmp.ne.s32.totalorder %s439, %s440
      %p454 = scmp.eq.s32.totalorder %s40, 3
      %p455 = por %p453, %p454
      %p457 = scmp.ne.s32.totalorder %s440, %s456
      %p458 = scmp.eq.s32.totalorder %s40, 0
      %p459 = por %p457, %p458
      %s460 = ssub.s32 %s41, %s53
      %p461 = scmp.eq.s32.totalorder %s460, 0
      %s463 = sadd.s32 %s462, 1
      %s464 = scalar_select %p461, %s462, %s463
      %p467 = pneg %p461
      %p468 = scmp.eq.s32.totalorder %s34, 3
      %p469 = por %p467, %p468
      %p470 = scmp.ne.s32.totalorder %s462, %s465
      %p471 = scmp.eq.s32.totalorder %s34, 0
      %p472 = por %p470, %p471
      %p473 = scmp.ne.s32.totalorder %s462, %s465
      %p474 = scmp.eq.s32.totalorder %s39, 3
      %p475 = por %p473, %p474
      %p476 = scmp.ne.s32.totalorder %s465, %s466
      %p477 = scmp.eq.s32.totalorder %s39, 0
      %p478 = por %p476, %p477
      %p479 = scmp.ne.s32.totalorder %s465, %s466
      %p480 = scmp.eq.s32.totalorder %s40, 3
      %p481 = por %p479, %p480
      %p483 = scmp.ne.s32.totalorder %s466, %s482
      %p484 = scmp.eq.s32.totalorder %s40, 0
      %p485 = por %p483, %p484
      %p486 = scmp.le.s32.totalorder 1, %s34
      %p487 = scmp.lt.s32.totalorder %s34, 5
      %p488 = pnand %p486, %p487
      %p489 = pneg %p488
      // Predicated region
      $region9: #{tpu_custom_call.1} parent=5 // pred_check
        _
      $region10: #{tpu_custom_call.1} parent=5 // pred_check_branch
        %491 = sbr.rel (%p488) target = $region12
      $region11: #{tpu_custom_call.1} parent=5 // pred_region
        %s492 = ssub.s32 %s34, 1
        // Predicated region
        $region13: #{tpu_custom_call.1} parent=11 // pred_check
          %p493 = pneg %p119
        $region14: #{tpu_custom_call.1} parent=11 // pred_check_branch
          %495 = sbr.rel (%p493) target = $region16
        $region15: #{tpu_custom_call.1} parent=11 // pred_region
          _
        $region16: #{tpu_custom_call.1} parent=11 // pred_fallthru
          _
        // Predicated region
        $region17: #{tpu_custom_call.1} parent=11 // pred_check
          %p496 = pneg %p140
        $region18: #{tpu_custom_call.1} parent=11 // pred_check_branch
          %498 = sbr.rel (%p496) target = $region20
        $region19: #{tpu_custom_call.1} parent=11 // pred_region
          %500 = vsyncadd [#allocation7], 0
          %s502 = sshll.u32 %s3, 4
          %s503 = int_to_ptr.hbm [resolvable:$true] %s502
          %s504 = sshll.u32 [#allocation8], 4
          %s505 = int_to_ptr.vmem [resolvable:$true] %s504
          %507 = dma.hbm_to_vmem [thread:$0]  %s503, 16, %s505, [#allocation7]
        $region20: #{tpu_custom_call.1} parent=11 // pred_fallthru
          _
      $region12: #{tpu_custom_call.1} parent=5 // pred_fallthru
        _
      %p508 = scmp.lt.s32.totalorder %s34, 4
      // Predicated region
      $region21: #{tpu_custom_call.1} parent=5 // pred_check
        %p509 = pneg %p508
      $region22: #{tpu_custom_call.1} parent=5 // pred_check_branch
        %511 = sbr.rel (%p509) target = $region24
      $region23: #{tpu_custom_call.1} parent=5 // pred_region
        // Predicated region
        $region25: #{tpu_custom_call.1} parent=23 // pred_check
          %p512 = pneg %p66
        $region26: #{tpu_custom_call.1} parent=23 // pred_check_branch
          %514 = sbr.rel (%p512) target = $region28
        $region27: #{tpu_custom_call.1} parent=23 // pred_region
          %s515 = sand.u32 %s56, 1
          %s516 = scalar_lea.sflag [#allocation4], %s515
          %s517 = sand.u32 %s56, 1
          %s518 = smul.addr %s517, 8
          %s519 = scalar_lea.vmem [#allocation3], %s518
          %521 = vsyncadd %s516, 0
          %s522 = smul.addr %s41, 8
          %s523 = scalar_lea.hbm %s0, %s522
          %s525 = sshll.u32 %s523, 4
          %s526 = int_to_ptr.hbm [resolvable:$true] %s525
          %s527 = sshll.u32 %s519, 4
          %s528 = int_to_ptr.vmem [resolvable:$true] %s527
          %530 = dma.hbm_to_vmem [thread:$0]  %s526, 128, %s528, %s516
        $region28: #{tpu_custom_call.1} parent=23 // pred_fallthru
          _
        // Predicated region
        $region29: #{tpu_custom_call.1} parent=23 // pred_check
          %p531 = pneg %p92
        $region30: #{tpu_custom_call.1} parent=23 // pred_check_branch
          %533 = sbr.rel (%p531) target = $region32
        $region31: #{tpu_custom_call.1} parent=23 // pred_region
          %s534 = sand.u32 %s34, 1
          %s535 = scalar_lea.sflag [#allocation7], %s534
          %s536 = sand.u32 %s82, 1
          %s537 = scalar_lea.vmem [#allocation6], %s536
          %539 = vsyncadd %s535, 0
          %s540 = scalar_lea.hbm %s1, %s41
          %s542 = sshll.u32 %s540, 4
          %s543 = int_to_ptr.hbm [resolvable:$true] %s542
          %s544 = sshll.u32 %s537, 4
          %s545 = int_to_ptr.vmem [resolvable:$true] %s544
          %547 = dma.hbm_to_vmem [thread:$0]  %s543, 16, %s545, %s535
        $region32: #{tpu_custom_call.1} parent=23 // pred_fallthru
          _
        // Predicated region
        $region33: #{tpu_custom_call.1} parent=23 // pred_check
          %p548 = pneg %p160
        $region34: #{tpu_custom_call.1} parent=23 // pred_check_branch
          %550 = sbr.rel (%p548) target = $region36
        $region35: #{tpu_custom_call.1} parent=23 // pred_region
          %p551 = scmp.lt.s32.totalorder %s42, 1
          %s552 = scalar_select %p551, %s42, 1
          %s553 = smul.addr %s552, 4
          %s554 = smul.addr %s553, 4
          %s555 = scalar_lea.vmem %s4, %s554
        $region36: #{tpu_custom_call.1} parent=23 // pred_fallthru
          _
        // Predicated region
        $region37: #{tpu_custom_call.1} parent=23 // pred_check
          %p556 = pneg %p186
        $region38: #{tpu_custom_call.1} parent=23 // pred_check_branch
          %558 = sbr.rel (%p556) target = $region40
        $region39: #{tpu_custom_call.1} parent=23 // pred_region
          %p559 = scmp.lt.s32.totalorder %s42, 1
          %s560 = scalar_select %p559, %s42, 1
          %s561 = scalar_lea.vmem %s5, %s560
        $region40: #{tpu_custom_call.1} parent=23 // pred_fallthru
          _
        // Predicated region
        $region41: #{tpu_custom_call.1} parent=23 // pred_check
          %p562 = pneg %p212
        $region42: #{tpu_custom_call.1} parent=23 // pred_check_branch
          %564 = sbr.rel (%p562) target = $region44
        $region43: #{tpu_custom_call.1} parent=23 // pred_region
          %p565 = scmp.lt.s32.totalorder %s42, 1
          %s566 = scalar_select %p565, %s42, 1
          %s567 = smul.addr %s566, 4
          %s568 = smul.addr %s567, 4
          %s569 = scalar_lea.vmem %s6, %s568
        $region44: #{tpu_custom_call.1} parent=23 // pred_fallthru
          _
        // Predicated region
        $region45: #{tpu_custom_call.1} parent=23 // pred_check
          %p570 = pneg %p238
        $region46: #{tpu_custom_call.1} parent=23 // pred_check_branch
          %572 = sbr.rel (%p570) target = $region48
        $region47: #{tpu_custom_call.1} parent=23 // pred_region
          %p573 = scmp.lt.s32.totalorder %s42, 1
          %s574 = scalar_select %p573, %s42, 1
          %s575 = scalar_lea.vmem %s7, %s574
        $region48: #{tpu_custom_call.1} parent=23 // pred_fallthru
          _
        // Predicated region
        $region49: #{tpu_custom_call.1} parent=23 // pred_check
          %p576 = pneg %p264
        $region50: #{tpu_custom_call.1} parent=23 // pred_check_branch
          %578 = sbr.rel (%p576) target = $region52
        $region51: #{tpu_custom_call.1} parent=23 // pred_region
          %p579 = scmp.lt.s32.totalorder %s42, 1
          %s580 = scalar_select %p579, %s42, 1
          %s581 = scalar_lea.vmem %s8, %s580
        $region52: #{tpu_custom_call.1} parent=23 // pred_fallthru
          _
        // Predicated region
        $region53: #{tpu_custom_call.1} parent=23 // pred_check
          %p582 = pneg %p290
        $region54: #{tpu_custom_call.1} parent=23 // pred_check_branch
          %584 = sbr.rel (%p582) target = $region56
        $region55: #{tpu_custom_call.1} parent=23 // pred_region
          %s585 = sand.u32 %s34, 1
          %s586 = scalar_lea.sflag [#allocation10], %s585
          %s587 = sand.u32 %s280, 1
          %s588 = scalar_lea.vmem [#allocation9], %s587
          %590 = vsyncadd %s586, 0
          %s591 = scalar_lea.hbm %s9, %s42
          %s593 = sshll.u32 %s591, 4
          %s594 = int_to_ptr.hbm [resolvable:$true] %s593
          %s595 = sshll.u32 %s588, 4
          %s596 = int_to_ptr.vmem [resolvable:$true] %s595
          %598 = dma.hbm_to_vmem [thread:$0]  %s594, 16, %s596, %s586
        $region56: #{tpu_custom_call.1} parent=23 // pred_fallthru
          _
        // Predicated region
        $region57: #{tpu_custom_call.1} parent=23 // pred_check
          %p599 = pneg %p316
        $region58: #{tpu_custom_call.1} parent=23 // pred_check_branch
          %601 = sbr.rel (%p599) target = $region60
        $region59: #{tpu_custom_call.1} parent=23 // pred_region
          %p602 = scmp.lt.s32.totalorder %s42, 1
          %s603 = scalar_select %p602, %s42, 1
          %s604 = smul.addr %s603, 4
          %s605 = smul.addr %s604, 4
          %s606 = scalar_lea.vmem %s10, %s605
        $region60: #{tpu_custom_call.1} parent=23 // pred_fallthru
          _
        // Predicated region
        $region61: #{tpu_custom_call.1} parent=23 // pred_check
          %p607 = pneg %p342
        $region62: #{tpu_custom_call.1} parent=23 // pred_check_branch
          %609 = sbr.rel (%p607) target = $region64
        $region63: #{tpu_custom_call.1} parent=23 // pred_region
          %p610 = scmp.lt.s32.totalorder %s42, 1
          %s611 = scalar_select %p610, %s42, 1
          %s612 = scalar_lea.vmem %s11, %s611
        $region64: #{tpu_custom_call.1} parent=23 // pred_fallthru
          _
        // Predicated region
        $region65: #{tpu_custom_call.1} parent=23 // pred_check
          %p613 = pneg %p368
        $region66: #{tpu_custom_call.1} parent=23 // pred_check_branch
          %615 = sbr.rel (%p613) target = $region68
        $region67: #{tpu_custom_call.1} parent=23 // pred_region
          %p616 = scmp.lt.s32.totalorder %s42, 1
          %s617 = scalar_select %p616, %s42, 1
          %s618 = smul.addr %s617, 8
          %s619 = smul.addr %s618, 4
          %s620 = scalar_lea.vmem %s12, %s619
        $region68: #{tpu_custom_call.1} parent=23 // pred_fallthru
          _
        // Predicated region
        $region69: #{tpu_custom_call.1} parent=23 // pred_check
          %p621 = pneg %p394
        $region70: #{tpu_custom_call.1} parent=23 // pred_check_branch
          %623 = sbr.rel (%p621) target = $region72
        $region71: #{tpu_custom_call.1} parent=23 // pred_region
          %p624 = scmp.lt.s32.totalorder %s42, 1
          %s625 = scalar_select %p624, %s42, 1
          %s626 = scalar_lea.vmem %s13, %s625
        $region72: #{tpu_custom_call.1} parent=23 // pred_fallthru
          _
        // Predicated region
        $region73: #{tpu_custom_call.1} parent=23 // pred_check
          %p627 = pneg %p420
        $region74: #{tpu_custom_call.1} parent=23 // pred_check_branch
          %629 = sbr.rel (%p627) target = $region76
        $region75: #{tpu_custom_call.1} parent=23 // pred_region
          %p630 = scmp.lt.s32.totalorder %s42, 1
          %s631 = scalar_select %p630, %s42, 1
          %s632 = scalar_lea.vmem %s14, %s631
        $region76: #{tpu_custom_call.1} parent=23 // pred_fallthru
          _
        // Predicated region
        $region77: #{tpu_custom_call.1} parent=23 // pred_check
          %p633 = pneg %p446
        $region78: #{tpu_custom_call.1} parent=23 // pred_check_branch
          %635 = sbr.rel (%p633) target = $region80
        $region79: #{tpu_custom_call.1} parent=23 // pred_region
          %s636 = sand.u32 %s34, 1
          %s637 = scalar_lea.sflag [#allocation10], %s636
          %s638 = sand.u32 %s436, 1
          %s639 = scalar_lea.vmem [#allocation11], %s638
          %641 = vsyncadd %s637, 0
          %s642 = scalar_lea.hbm %s15, %s42
          %s644 = sshll.u32 %s642, 4
          %s645 = int_to_ptr.hbm [resolvable:$true] %s644
          %s646 = sshll.u32 %s639, 4
          %s647 = int_to_ptr.vmem [resolvable:$true] %s646
          %649 = dma.hbm_to_vmem [thread:$0]  %s645, 16, %s647, %s637
        $region80: #{tpu_custom_call.1} parent=23 // pred_fallthru
          _
      $region24: #{tpu_custom_call.1} parent=5 // pred_fallthru
        _
      %p650 = scmp.le.s32.totalorder 1, %s34
      %p651 = scmp.lt.s32.totalorder %s34, 5
      %p652 = pnand %p650, %p651
      %p653 = pneg %p652
      // Predicated region
      $region81: #{tpu_custom_call.1} parent=5 // pred_check
        _
      $region82: #{tpu_custom_call.1} parent=5 // pred_check_branch
        %655 = sbr.rel (%p652) target = $region84
      $region83: #{tpu_custom_call.1} parent=5 // pred_region
        %s656 = ssub.s32 %s34, 1
        %s657 = sand.u32 %s59, 1
        %s658 = scalar_lea.sflag [#allocation4], %s657
        %s659 = sand.u32 %s59, 1
        %s660 = smul.addr %s659, 8
        %s661 = scalar_lea.vmem [#allocation3], %s660
        // Predicated region
        $region85: #{tpu_custom_call.1} parent=83 // pred_check
          %p662 = pneg %p72
        $region86: #{tpu_custom_call.1} parent=83 // pred_check_branch
          %664 = sbr.rel (%p662) target = $region88
        $region87: #{tpu_custom_call.1} parent=83 // pred_region
          %666 = dma.done %s658, 128
        $region88: #{tpu_custom_call.1} parent=83 // pred_fallthru
          _
        %s667 = sand.u32 %s39, 1
        %s668 = scalar_lea.sflag [#allocation7], %s667
        %s669 = sand.u32 %s85, 1
        %s670 = scalar_lea.vmem [#allocation6], %s669
        // Predicated region
        $region89: #{tpu_custom_call.1} parent=83 // pred_check
          %p671 = pneg %p98
        $region90: #{tpu_custom_call.1} parent=83 // pred_check_branch
          %673 = sbr.rel (%p671) target = $region92
        $region91: #{tpu_custom_call.1} parent=83 // pred_region
          %675 = dma.done %s668, 16
        $region92: #{tpu_custom_call.1} parent=83 // pred_fallthru
          _
        // Predicated region
        $region93: #{tpu_custom_call.1} parent=83 // pred_check
          %p676 = pneg %p140
        $region94: #{tpu_custom_call.1} parent=83 // pred_check_branch
          %678 = sbr.rel (%p676) target = $region96
        $region95: #{tpu_custom_call.1} parent=83 // pred_region
          %680 = dma.done [#allocation7], 16
        $region96: #{tpu_custom_call.1} parent=83 // pred_fallthru
          _
        %s681 = sand.u32 %s39, 1
        %s682 = scalar_lea.sflag [#allocation10], %s681
        %s683 = sand.u32 %s283, 1
        %s684 = scalar_lea.vmem [#allocation9], %s683
        // Predicated region
        $region97: #{tpu_custom_call.1} parent=83 // pred_check
          %p685 = pneg %p296
        $region98: #{tpu_custom_call.1} parent=83 // pred_check_branch
          %687 = sbr.rel (%p685) target = $region100
        $region99: #{tpu_custom_call.1} parent=83 // pred_region
          %689 = dma.done %s682, 16
        $region100: #{tpu_custom_call.1} parent=83 // pred_fallthru
          _
        %s690 = sand.u32 %s39, 1
        %s691 = scalar_lea.sflag [#allocation10], %s690
        %s692 = sand.u32 %s439, 1
        %s693 = scalar_lea.vmem [#allocation11], %s692
        // Predicated region
        $region101: #{tpu_custom_call.1} parent=83 // pred_check
          %p694 = pneg %p452
        $region102: #{tpu_custom_call.1} parent=83 // pred_check_branch
          %696 = sbr.rel (%p694) target = $region104
        $region103: #{tpu_custom_call.1} parent=83 // pred_region
          %698 = dma.done %s691, 16
        $region104: #{tpu_custom_call.1} parent=83 // pred_fallthru
          _
        %s699 = sand.u32 %s59, 1
        %s700 = scalar_lea.sflag [#allocation4], %s699
        %s701 = sand.u32 %s59, 1
        %s702 = smul.addr %s701, 8
        %s703 = scalar_lea.vmem [#allocation3], %s702
        %p704 = pneg %p72
        %p705 = pneg %p69
        %s706 = sand.u32 %s39, 1
        %s707 = scalar_lea.sflag [#allocation7], %s706
        %s708 = sand.u32 %s85, 1
        %s709 = scalar_lea.vmem [#allocation6], %s708
        %p710 = pneg %p98
        %p711 = pneg %p95
        %p712 = pneg %p119
        %p713 = pneg %p116
        %p714 = pneg %p140
        %p715 = pneg %p137
        %p716 = scmp.lt.s32.totalorder %s44, 1
        %s717 = scalar_select %p716, %s44, 1
        %s718 = smul.addr %s717, 4
        %s719 = smul.addr %s718, 4
        %s720 = scalar_lea.vmem %s4, %s719
        %p721 = pneg %p166
        %p722 = pneg %p163
        %p723 = scmp.lt.s32.totalorder %s44, 1
        %s724 = scalar_select %p723, %s44, 1
        %s725 = scalar_lea.vmem %s5, %s724
        %p726 = pneg %p192
        %p727 = pneg %p189
        %p728 = scmp.lt.s32.totalorder %s44, 1
        %s729 = scalar_select %p728, %s44, 1
        %s730 = smul.addr %s729, 4
        %s731 = smul.addr %s730, 4
        %s732 = scalar_lea.vmem %s6, %s731
        %p733 = pneg %p218
        %p734 = pneg %p215
        %p735 = scmp.lt.s32.totalorder %s44, 1
        %s736 = scalar_select %p735, %s44, 1
        %s737 = scalar_lea.vmem %s7, %s736
        %p738 = pneg %p244
        %p739 = pneg %p241
        %p740 = scmp.lt.s32.totalorder %s44, 1
        %s741 = scalar_select %p740, %s44, 1
        %s742 = scalar_lea.vmem %s8, %s741
        %p743 = pneg %p270
        %p744 = pneg %p267
        %s745 = sand.u32 %s39, 1
        %s746 = scalar_lea.sflag [#allocation10], %s745
        %s747 = sand.u32 %s283, 1
        %s748 = scalar_lea.vmem [#allocation9], %s747
        %p749 = pneg %p296
        %p750 = pneg %p293
        %p751 = scmp.lt.s32.totalorder %s44, 1
        %s752 = scalar_select %p751, %s44, 1
        %s753 = smul.addr %s752, 4
        %s754 = smul.addr %s753, 4
        %s755 = scalar_lea.vmem %s10, %s754
        %p756 = pneg %p322
        %p757 = pneg %p319
        %p758 = scmp.lt.s32.totalorder %s44, 1
        %s759 = scalar_select %p758, %s44, 1
        %s760 = scalar_lea.vmem %s11, %s759
        %p761 = pneg %p348
        %p762 = pneg %p345
        %p763 = scmp.lt.s32.totalorder %s44, 1
        %s764 = scalar_select %p763, %s44, 1
        %s765 = smul.addr %s764, 8
        %s766 = smul.addr %s765, 4
        %s767 = scalar_lea.vmem %s12, %s766
        %p768 = pneg %p374
        %p769 = pneg %p371
        %p770 = scmp.lt.s32.totalorder %s44, 1
        %s771 = scalar_select %p770, %s44, 1
        %s772 = scalar_lea.vmem %s13, %s771
        %p773 = pneg %p400
        %p774 = pneg %p397
        %p775 = scmp.lt.s32.totalorder %s44, 1
        %s776 = scalar_select %p775, %s44, 1
        %s777 = scalar_lea.vmem %s14, %s776
        %p778 = pneg %p426
        %p779 = pneg %p423
        %s780 = sand.u32 %s39, 1
        %s781 = scalar_lea.sflag [#allocation10], %s780
        %s782 = sand.u32 %s439, 1
        %s783 = scalar_lea.vmem [#allocation11], %s782
        %p784 = pneg %p452
        %p785 = pneg %p449
        %p786 = pneg %p478
        %p787 = pneg %p475
        %s788 = sand.u32 %s465, 1
        %s789 = scalar_lea.sflag [#allocation5], %s788
        %s790 = sand.u32 %s465, 1
        %s791 = smul.addr %s790, 8
        %s792 = scalar_lea.vmem [#allocation12], %s791
        %p793 = scmp.lt.s32.totalorder %s44, 1
        %s794 = scalar_select %p793, %s44, 1
        %s795 = smul.addr %s794, 4
        %s796 = smul.addr %s795, 4
        %s797 = scalar_lea.vmem %s4, %s796
        %p798 = scmp.lt.s32.totalorder %s44, 1
        %s799 = scalar_select %p798, %s44, 1
        %s800 = scalar_lea.vmem %s5, %s799
        %p801 = scmp.lt.s32.totalorder %s44, 1
        %s802 = scalar_select %p801, %s44, 1
        %s803 = smul.addr %s802, 4
        %s804 = smul.addr %s803, 4
        %s805 = scalar_lea.vmem %s6, %s804
        %p806 = scmp.lt.s32.totalorder %s44, 1
        %s807 = scalar_select %p806, %s44, 1
        %s808 = scalar_lea.vmem %s7, %s807
        %p809 = scmp.lt.s32.totalorder %s44, 1
        %s810 = scalar_select %p809, %s44, 1
        %s811 = scalar_lea.vmem %s8, %s810
        %p812 = scmp.lt.s32.totalorder %s44, 1
        %s813 = scalar_select %p812, %s44, 1
        %s814 = smul.addr %s813, 4
        %s815 = smul.addr %s814, 4
        %s816 = scalar_lea.vmem %s10, %s815
        %p817 = scmp.lt.s32.totalorder %s44, 1
        %s818 = scalar_select %p817, %s44, 1
        %s819 = scalar_lea.vmem %s11, %s818
        %p820 = scmp.lt.s32.totalorder %s44, 1
        %s821 = scalar_select %p820, %s44, 1
        %s822 = smul.addr %s821, 8
        %s823 = smul.addr %s822, 4
        %s824 = scalar_lea.vmem %s12, %s823
        %p825 = scmp.lt.s32.totalorder %s44, 1
        %s826 = scalar_select %p825, %s44, 1
        %s827 = scalar_lea.vmem %s13, %s826
        %p828 = scmp.lt.s32.totalorder %s44, 1
        %s829 = scalar_select %p828, %s44, 1
        %s830 = scalar_lea.vmem %s14, %s829
        %p832 = scmp.eq.s32.totalorder %s44, 0
        // Predicated region
        $region105: #{tpu_custom_call.1} parent=83 // pred_check
          %p833 = pneg %p832
        $region106: #{tpu_custom_call.1} parent=83 // pred_check_branch
          %835 = sbr.rel (%p833) target = $region108
        $region107: #{tpu_custom_call.1} parent=83 // pred_region
          %v836 = vld [vmem:[%s661] sm:$0xff]
          %v837 = vld [vmem:[%s2] sm:$0x1]
          %v838 = vld [vmem:[#allocation8] sm:$0x1]
          %vm839 = vcmask 261120
          %v840 = vsel %vm839, %v836, 0.0
          %841 = vadd.xlane.f32.xlu0 %v840
          %v842 = vpop.xlane.xlu0 %841
          %v843 = vrcp.pop 32.0
          %v844 = vmul.f32 32.0, %v843
          %v845 = vsub.f32 1.0, %v844
          %v846 = vmul.f32 %v843, %v845
          %v847 = vadd.f32 %v843, %v846
          %vm848 = vweird.f32 %v843
          %v849 = vsel %vm848, %v843, %v847
          %v850 = vmul.f32 %v842, %v849
          %v851 = vsub.f32 %v836, %v850
          %v852 = vmul.f32 %v851, %v851
          %v853 = vsel %vm839, %v852, 0.0
          %854 = vadd.xlane.f32.xlu0 %v853
          %v855 = vpop.xlane.xlu0 %854
          %v856 = vmul.f32 %v855, %v849
          %v857 = vadd.f32 %v856, 1e-05
          %v858 = vrsqrt.pop %v857
          %v859 = vmul.f32 %v858, %v857
          %v860 = vmul.f32 %v859, %v858
          %v861 = vmul.f32 0.5, %v860
          %v862 = vsub.f32 1.5, %v861
          %v863 = vmul.f32 %v858, %v862
          %vm864 = vweird.f32 %v857
          %vm865 = vweird.f32 %v858
          %vm866 = vmor %vm864, %vm865
          %v867 = vsel %vm866, %v858, %v863
          %v868 = vmul.f32 %v851, %v867
          %v870 = vperm.slane %v837, 0
          %v872 = vmul.f32 %v868, %v870
          %v874 = vperm.slane %v838, 0
          %v876 = vadd.f32 %v872, %v874
          %877 = vst.msk [vmem:[%s792] sm:$0xff] %vm839, %v876
        $region108: #{tpu_custom_call.1} parent=83 // pred_fallthru
          _
        %v878 = vld [vmem:[%s792] sm:$0xff]
        %v879 = vld [vmem:[%s670] sm:$0x1]
        %v880 = vld [vmem:[%s797] sm:$0xf]
        %v881 = vld [vmem:[%s797 + $0x4] sm:$0xf]
        %v882 = vld [vmem:[%s797 + $0x8] sm:$0xf]
        %v883 = vld [vmem:[%s797 + $0xc] sm:$0xf]
        %v884 = vpack.c.bf16 %v878, %v878
        %v885 = vld [vmem:[%s800] sm:$0x1]
        %v887 = vperm.slane %v885, 0
        %v893 = vunpack.c.l.b16 %v880
        %v894 = vunpack.c.l.b16 %v881
        %v895 = vunpack.c.l.b16 %v882
        %v896 = vunpack.c.l.b16 %v883
        %v897 = vpack.c.b16 %v894, %v893
        %v898 = vpack.c.b16 %v896, %v895
        %vm901 = vcmask 261120
        %v903 = vsel %vm901, %v884, 0
        %905 = vmatpush.bf16.msra.mxu0 0
        %906 = vmatpush.bf16.msra.mxu0 0
        %907 = vmatpush.bf16.msra.mxu0 0
        %908 = vmatpush.bf16.msra.mxu0 0
        %909 = vmatpush.bf16.msra.mxu0 0
        %910 = vmatpush.bf16.msra.mxu0 0
        %911 = vmatpush.bf16.msra.mxu0 %v898
        %912 = vmatpush.bf16.msra.mxu0 %v897
        %913 = vmatmul.bf16.gmra.mxu0 %v903
        %v914 = vpop.f32.mrf.mxu0
        %v915 = vadd.f32 %v887, %v914
        %v916 = vpop.f32.mrf.mxu0
        %917 = vdwg.mxu0
        %v918 = vpack.c.bf16 %v915, %v915
        %920 = vrot.lane.b32.xlu0 %v918, 120
        %v921 = vpop.permute.xlu0 %920
        %922 = vrot.lane.b32.xlu0 %v918, 112
        %v923 = vpop.permute.xlu0 %922
        %924 = vrot.lane.b32.xlu0 %v918, 104
        %v925 = vpop.permute.xlu0 %924
        %v927 = vperm.slane %v879, 0
        %v929 = vunpack.c.l.b16 %v918
        %v930 = vpack.c.b16 %v929, %v929
        %931 = vrot.lane.b32.xlu0 %v930, 96
        %v932 = vpop.permute.xlu0 %931
        %vm933 = vcmask 64512
        %v935 = vsel %vm933, %v918, 0
        %v938 = vsel %vm933, %v932, 0
        %940 = vmatpush.bf16.xpose.msra.mxu0 0
        %941 = vmatpush.bf16.xpose.msra.mxu0 0
        %942 = vmatpush.bf16.xpose.msra.mxu0 0
        %943 = vmatpush.bf16.xpose.msra.mxu0 0
        %944 = vmatpush.bf16.xpose.msra.mxu0 0
        %945 = vmatpush.bf16.xpose.msra.mxu0 0
        %946 = vmatpush.bf16.xpose.msra.mxu0 0
        %947 = vmatpush.bf16.xpose.msra.mxu0 %v938
        %948 = vmatmul.bf16.gmra.mxu0 %v935
        %v949 = vpop.f32.mrf.mxu0
        %v950 = vadd.f32 %v927, %v949
        %v951 = vpop.f32.mrf.mxu0
        %952 = vdwg.mxu0
        %v953 = vunpack.c.l.b16 %v921
        %v954 = vpack.c.b16 %v953, %v953
        %955 = vrot.lane.b32.xlu0 %v954, 96
        %v956 = vpop.permute.xlu0 %955
        %v958 = vsel %vm933, %v921, 0
        %v961 = vsel %vm933, %v956, 0
        %963 = vmatpush.bf16.xpose.msra.mxu0 0
        %964 = vmatpush.bf16.xpose.msra.mxu0 0
        %965 = vmatpush.bf16.xpose.msra.mxu0 0
        %966 = vmatpush.bf16.xpose.msra.mxu0 0
        %967 = vmatpush.bf16.xpose.msra.mxu0 0
        %968 = vmatpush.bf16.xpose.msra.mxu0 0
        %969 = vmatpush.bf16.xpose.msra.mxu0 0
        %970 = vmatpush.bf16.xpose.msra.mxu0 %v961
        %971 = vmatmul.bf16.gmra.mxu0 %v958
        %v972 = vpop.f32.mrf.mxu0
        %v973 = vadd.f32 %v927, %v972
        %v974 = vpop.f32.mrf.mxu0
        %975 = vdwg.mxu0
        %v976 = vunpack.c.l.b16 %v923
        %v977 = vpack.c.b16 %v976, %v976
        %978 = vrot.lane.b32.xlu0 %v977, 96
        %v979 = vpop.permute.xlu0 %978
        %v981 = vsel %vm933, %v923, 0
        %v984 = vsel %vm933, %v979, 0
        %986 = vmatpush.bf16.xpose.msra.mxu0 0
        %987 = vmatpush.bf16.xpose.msra.mxu0 0
        %988 = vmatpush.bf16.xpose.msra.mxu0 0
        %989 = vmatpush.bf16.xpose.msra.mxu0 0
        %990 = vmatpush.bf16.xpose.msra.mxu0 0
        %991 = vmatpush.bf16.xpose.msra.mxu0 0
        %992 = vmatpush.bf16.xpose.msra.mxu0 0
        %993 = vmatpush.bf16.xpose.msra.mxu0 %v984
        %994 = vmatmul.bf16.gmra.mxu0 %v981
        %v995 = vpop.f32.mrf.mxu0
        %v996 = vadd.f32 %v927, %v995
        %v997 = vpop.f32.mrf.mxu0
        %998 = vdwg.mxu0
        %v999 = vunpack.c.l.b16 %v925
        %v1000 = vpack.c.b16 %v999, %v999
        %1001 = vrot.lane.b32.xlu0 %v1000, 96
        %v1002 = vpop.permute.xlu0 %1001
        %v1004 = vsel %vm933, %v925, 0
        %v1007 = vsel %vm933, %v1002, 0
        %1009 = vmatpush.bf16.xpose.msra.mxu0 0
        %1010 = vmatpush.bf16.xpose.msra.mxu0 0
        %1011 = vmatpush.bf16.xpose.msra.mxu0 0
        %1012 = vmatpush.bf16.xpose.msra.mxu0 0
        %1013 = vmatpush.bf16.xpose.msra.mxu0 0
        %1014 = vmatpush.bf16.xpose.msra.mxu0 0
        %1015 = vmatpush.bf16.xpose.msra.mxu0 0
        %1016 = vmatpush.bf16.xpose.msra.mxu0 %v1007
        %1017 = vmatmul.bf16.gmra.mxu0 %v1004
        %v1018 = vpop.f32.mrf.mxu0
        %v1019 = vadd.f32 %v927, %v1018
        %v1020 = vpop.f32.mrf.mxu0
        %1021 = vdwg.mxu0
        %v1022 = vsel %vm933, %v950, -inf
        %1023 = vmax.xlane.f32.xlu0 %v1022
        %v1024 = vpop.xlane.xlu0 %1023
        %v1025 = vsel %vm933, %v973, -inf
        %1026 = vmax.xlane.f32.xlu0 %v1025
        %v1027 = vpop.xlane.xlu0 %1026
        %v1028 = vsel %vm933, %v996, -inf
        %1029 = vmax.xlane.f32.xlu0 %v1028
        %v1030 = vpop.xlane.xlu0 %1029
        %v1031 = vsel %vm933, %v1019, -inf
        %1032 = vmax.xlane.f32.xlu0 %v1031
        %v1033 = vpop.xlane.xlu0 %1032
        %v1034 = vsub.f32 %v950, %v1024
        %v1035 = vsub.f32 %v973, %v1027
        %v1036 = vsub.f32 %v996, %v1030
        %v1037 = vsub.f32 %v1019, %v1033
        %v1038 = vmul.f32 %v1034, 1.442695
        %v1039 = vpow.pop %v1038
        %v1040 = vmul.f32 %v1035, 1.442695
        %v1041 = vpow.pop %v1040
        %v1042 = vmul.f32 %v1036, 1.442695
        %v1043 = vpow.pop %v1042
        %v1044 = vmul.f32 %v1037, 1.442695
        %v1045 = vpow.pop %v1044
        %v1046 = vsel %vm933, %v1039, 0.0
        %1047 = vadd.xlane.f32.xlu0 %v1046
        %v1048 = vpop.xlane.xlu0 %1047
        %v1049 = vsel %vm933, %v1041, 0.0
        %1050 = vadd.xlane.f32.xlu0 %v1049
        %v1051 = vpop.xlane.xlu0 %1050
        %v1052 = vsel %vm933, %v1043, 0.0
        %1053 = vadd.xlane.f32.xlu0 %v1052
        %v1054 = vpop.xlane.xlu0 %1053
        %v1055 = vsel %vm933, %v1045, 0.0
        %1056 = vadd.xlane.f32.xlu0 %v1055
        %v1057 = vpop.xlane.xlu0 %1056
        %v1058 = vrcp.pop %v1048
        %v1059 = vrcp.pop %v1051
        %v1060 = vrcp.pop %v1054
        %v1061 = vrcp.pop %v1057
        %v1062 = vmul.f32 %v1039, %v1058
        %v1063 = vmul.f32 %v1041, %v1059
        %v1064 = vmul.f32 %v1043, %v1060
        %v1065 = vmul.f32 %v1045, %v1061
        %v1066 = vpack.c.bf16 %v1062, %v1062
        %v1067 = vpack.c.bf16 %v1063, %v1063
        %v1068 = vpack.c.bf16 %v1064, %v1064
        %v1069 = vpack.c.bf16 %v1065, %v1065
        %1070 = vrot.lane.b32.xlu0 %v930, 64
        %v1071 = vpop.permute.xlu0 %1070
        %v1073 = vsel %vm933, %v1066, 0
        %vm1075 = vcmask 1043456
        %v1077 = vsel %vm1075, %v1071, 0
        %1079 = vmatpush.bf16.msra.mxu0 0
        %1080 = vmatpush.bf16.msra.mxu0 0
        %1081 = vmatpush.bf16.msra.mxu0 0
        %1082 = vmatpush.bf16.msra.mxu0 0
        %1083 = vmatpush.bf16.msra.mxu0 0
        %1084 = vmatpush.bf16.msra.mxu0 0
        %1085 = vmatpush.bf16.msra.mxu0 0
        %1086 = vmatpush.bf16.msra.mxu0 %v1077
        %1087 = vmatmul.bf16.gmra.mxu0 %v1073
        %v1088 = vpop.f32.mrf.mxu0
        %v1089 = vadd.f32 0.0, %v1088
        %v1090 = vpop.f32.mrf.mxu0
        %1091 = vdwg.mxu0
        %1092 = vrot.lane.b32.xlu0 %v954, 64
        %v1093 = vpop.permute.xlu0 %1092
        %v1095 = vsel %vm933, %v1067, 0
        %v1098 = vsel %vm1075, %v1093, 0
        %1100 = vmatpush.bf16.msra.mxu0 0
        %1101 = vmatpush.bf16.msra.mxu0 0
        %1102 = vmatpush.bf16.msra.mxu0 0
        %1103 = vmatpush.bf16.msra.mxu0 0
        %1104 = vmatpush.bf16.msra.mxu0 0
        %1105 = vmatpush.bf16.msra.mxu0 0
        %1106 = vmatpush.bf16.msra.mxu0 0
        %1107 = vmatpush.bf16.msra.mxu0 %v1098
        %1108 = vmatmul.bf16.gmra.mxu0 %v1095
        %v1109 = vpop.f32.mrf.mxu0
        %v1110 = vadd.f32 0.0, %v1109
        %v1111 = vpop.f32.mrf.mxu0
        %1112 = vdwg.mxu0
        %1113 = vrot.lane.b32.xlu0 %v977, 64
        %v1114 = vpop.permute.xlu0 %1113
        %v1116 = vsel %vm933, %v1068, 0
        %v1119 = vsel %vm1075, %v1114, 0
        %1121 = vmatpush.bf16.msra.mxu0 0
        %1122 = vmatpush.bf16.msra.mxu0 0
        %1123 = vmatpush.bf16.msra.mxu0 0
        %1124 = vmatpush.bf16.msra.mxu0 0
        %1125 = vmatpush.bf16.msra.mxu0 0
        %1126 = vmatpush.bf16.msra.mxu0 0
        %1127 = vmatpush.bf16.msra.mxu0 0
        %1128 = vmatpush.bf16.msra.mxu0 %v1119
        %1129 = vmatmul.bf16.gmra.mxu0 %v1116
        %v1130 = vpop.f32.mrf.mxu0
        %v1131 = vadd.f32 0.0, %v1130
        %v1132 = vpop.f32.mrf.mxu0
        %1133 = vdwg.mxu0
        %1134 = vrot.lane.b32.xlu0 %v1000, 64
        %v1135 = vpop.permute.xlu0 %1134
        %v1137 = vsel %vm933, %v1069, 0
        %v1140 = vsel %vm1075, %v1135, 0
        %1142 = vmatpush.bf16.msra.mxu0 0
        %1143 = vmatpush.bf16.msra.mxu0 0
        %1144 = vmatpush.bf16.msra.mxu0 0
        %1145 = vmatpush.bf16.msra.mxu0 0
        %1146 = vmatpush.bf16.msra.mxu0 0
        %1147 = vmatpush.bf16.msra.mxu0 0
        %1148 = vmatpush.bf16.msra.mxu0 0
        %1149 = vmatpush.bf16.msra.mxu0 %v1140
        %1150 = vmatmul.bf16.gmra.mxu0 %v1137
        %v1151 = vpop.f32.mrf.mxu0
        %v1152 = vadd.f32 0.0, %v1151
        %v1153 = vpop.f32.mrf.mxu0
        %1154 = vdwg.mxu0
        %v1155 = vpack.c.bf16 %v1089, %v1089
        %vm1156 = vcmask 60416
        %1157 = vst.msk [vmem:[#allocation2] sm:$0xf] %vm1156, %v1155
        %v1158 = vpack.c.bf16 %v1110, %v1110
        %1160 = vrot.lane.b32.xlu0 %v1158, 8
        %v1161 = vpop.permute.xlu0 %1160
        %vm1163 = vcmask 126016
        %1164 = vst.msk [vmem:[#allocation2] sm:$0xf] %vm1163, %v1161
        %v1165 = vpack.c.bf16 %v1131, %v1131
        %1167 = vrot.lane.b32.xlu0 %v1165, 16
        %v1168 = vpop.permute.xlu0 %1167
        %vm1170 = vcmask 191616
        %1171 = vst.msk [vmem:[#allocation2] sm:$0xf] %vm1170, %v1168
        %v1172 = vpack.c.bf16 %v1152, %v1152
        %1174 = vrot.lane.b32.xlu0 %v1172, 24
        %v1175 = vpop.permute.xlu0 %1174
        %vm1177 = vcmask 257216
        %1178 = vst.msk [vmem:[#allocation2] sm:$0xf] %vm1177, %v1175
        %v1179 = vld [vmem:[#allocation2] sm:$0xf]
        %v1180 = vld [vmem:[%s805] sm:$0xf]
        %v1181 = vld [vmem:[%s805 + $0x4] sm:$0xf]
        %v1182 = vld [vmem:[%s805 + $0x8] sm:$0xf]
        %v1183 = vld [vmem:[%s805 + $0xc] sm:$0xf]
        %v1184 = vld [vmem:[%s808] sm:$0x1]
        %v1186 = vperm.slane %v1184, 0
        %v1192 = vunpack.c.l.b16 %v1180
        %v1193 = vunpack.c.l.b16 %v1181
        %v1194 = vunpack.c.l.b16 %v1182
        %v1195 = vunpack.c.l.b16 %v1183
        %v1196 = vpack.c.b16 %v1193, %v1192
        %v1197 = vpack.c.b16 %v1195, %v1194
        %v1201 = vsel %vm901, %v1179, 0
        %1203 = vmatpush.bf16.msra.mxu0 0
        %1204 = vmatpush.bf16.msra.mxu0 0
        %1205 = vmatpush.bf16.msra.mxu0 0
        %1206 = vmatpush.bf16.msra.mxu0 0
        %1207 = vmatpush.bf16.msra.mxu0 0
        %1208 = vmatpush.bf16.msra.mxu0 0
        %1209 = vmatpush.bf16.msra.mxu0 %v1197
        %1210 = vmatpush.bf16.msra.mxu0 %v1196
        %1211 = vmatmul.bf16.gmra.mxu0 %v1201
        %v1212 = vpop.f32.mrf.mxu0
        %v1213 = vadd.f32 %v1186, %v1212
        %v1214 = vpop.f32.mrf.mxu0
        %1215 = vdwg.mxu0
        %v1216 = vadd.f32 %v878, %v1213
        %v1217 = vld [vmem:[%s811] sm:$0x1]
        %v1218 = vld [vmem:[%s684] sm:$0x1]
        %v1219 = vsel %vm901, %v1216, 0.0
        %1220 = vadd.xlane.f32.xlu0 %v1219
        %v1221 = vpop.xlane.xlu0 %1220
        %v1222 = vrcp.pop 32.0
        %v1223 = vmul.f32 32.0, %v1222
        %v1224 = vsub.f32 1.0, %v1223
        %v1225 = vmul.f32 %v1222, %v1224
        %v1226 = vadd.f32 %v1222, %v1225
        %vm1227 = vweird.f32 %v1222
        %v1228 = vsel %vm1227, %v1222, %v1226
        %v1229 = vmul.f32 %v1221, %v1228
        %v1230 = vsub.f32 %v1216, %v1229
        %v1231 = vmul.f32 %v1230, %v1230
        %v1232 = vsel %vm901, %v1231, 0.0
        %1233 = vadd.xlane.f32.xlu0 %v1232
        %v1234 = vpop.xlane.xlu0 %1233
        %v1235 = vmul.f32 %v1234, %v1228
        %v1236 = vadd.f32 %v1235, 1e-05
        %v1237 = vrsqrt.pop %v1236
        %v1238 = vmul.f32 %v1237, %v1236
        %v1239 = vmul.f32 %v1238, %v1237
        %v1240 = vmul.f32 0.5, %v1239
        %v1241 = vsub.f32 1.5, %v1240
        %v1242 = vmul.f32 %v1237, %v1241
        %vm1243 = vweird.f32 %v1236
        %vm1244 = vweird.f32 %v1237
        %vm1245 = vmor %vm1243, %vm1244
        %v1246 = vsel %vm1245, %v1237, %v1242
        %v1247 = vmul.f32 %v1230, %v1246
        %v1249 = vperm.slane %v1217, 0
        %v1251 = vmul.f32 %v1247, %v1249
        %v1253 = vperm.slane %v1218, 0
        %v1255 = vadd.f32 %v1251, %v1253
        %v1256 = vpack.c.bf16 %v1255, %v1255
        %v1257 = vld [vmem:[%s816] sm:$0xf]
        %v1258 = vld [vmem:[%s816 + $0x4] sm:$0xf]
        %v1259 = vld [vmem:[%s816 + $0x8] sm:$0xf]
        %v1260 = vld [vmem:[%s816 + $0xc] sm:$0xf]
        %v1261 = vld [vmem:[%s819] sm:$0x1]
        %v1263 = vperm.slane %v1261, 0
        %v1269 = vunpack.c.l.b16 %v1257
        %v1270 = vunpack.c.l.b16 %v1258
        %v1271 = vunpack.c.l.b16 %v1259
        %v1272 = vunpack.c.l.b16 %v1260
        %v1273 = vpack.c.b16 %v1270, %v1269
        %v1274 = vpack.c.b16 %v1272, %v1271
        %v1278 = vsel %vm901, %v1256, 0
        %1280 = vmatpush.bf16.msra.mxu0 0
        %1281 = vmatpush.bf16.msra.mxu0 0
        %1282 = vmatpush.bf16.msra.mxu0 0
        %1283 = vmatpush.bf16.msra.mxu0 0
        %1284 = vmatpush.bf16.msra.mxu0 0
        %1285 = vmatpush.bf16.msra.mxu0 0
        %1286 = vmatpush.bf16.msra.mxu0 %v1274
        %1287 = vmatpush.bf16.msra.mxu0 %v1273
        %1288 = vmatmul.bf16.gmra.mxu0 %v1278
        %v1289 = vpop.f32.mrf.mxu0
        %v1290 = vadd.f32 %v1263, %v1289
        %v1291 = vpop.f32.mrf.mxu0
        %1292 = vdwg.mxu0
        %v1293 = vmul.f32 %v1290, 0.5
        %v1294 = vmul.f32 %v1290, 0.7978846
        %v1295 = vmul.f32 %v1290, 0.044715
        %v1296 = vmul.f32 %v1295, %v1290
        %v1297 = vadd.f32 %v1296, 1.0
        %v1298 = vmul.f32 %v1294, %v1297
        %v1299 = vtanh.pop %v1298
        %v1300 = vadd.f32 %v1299, 1.0
        %v1301 = vmul.f32 %v1293, %v1300
        %v1302 = vpack.c.bf16 %v1301, %v1301
        %v1303 = vld [vmem:[%s824] sm:$0xf]
        %v1304 = vld [vmem:[%s824 + $0x4] sm:$0xf]
        %v1305 = vld [vmem:[%s824 + $0x8] sm:$0xf]
        %v1306 = vld [vmem:[%s824 + $0xc] sm:$0xf]
        %v1307 = vld [vmem:[%s824 + $0x10] sm:$0xf]
        %v1308 = vld [vmem:[%s824 + $0x14] sm:$0xf]
        %v1309 = vld [vmem:[%s824 + $0x18] sm:$0xf]
        %v1310 = vld [vmem:[%s824 + $0x1c] sm:$0xf]
        %v1311 = vld [vmem:[%s827] sm:$0x1]
        %v1313 = vperm.slane %v1311, 0
        %v1323 = vunpack.c.l.b16 %v1303
        %v1324 = vunpack.c.l.b16 %v1304
        %v1325 = vunpack.c.l.b16 %v1305
        %v1326 = vunpack.c.l.b16 %v1306
        %v1327 = vunpack.c.l.b16 %v1307
        %v1328 = vunpack.c.l.b16 %v1308
        %v1329 = vunpack.c.l.b16 %v1309
        %v1330 = vunpack.c.l.b16 %v1310
        %v1331 = vpack.c.b16 %v1324, %v1323
        %v1332 = vpack.c.b16 %v1326, %v1325
        %v1333 = vpack.c.b16 %v1328, %v1327
        %v1334 = vpack.c.b16 %v1330, %v1329
        %vm1339 = vcmask 523264
        %v1341 = vsel %vm1339, %v1302, 0
        %1343 = vmatpush.bf16.msra.mxu0 0
        %1344 = vmatpush.bf16.msra.mxu0 0
        %1345 = vmatpush.bf16.msra.mxu0 0
        %1346 = vmatpush.bf16.msra.mxu0 0
        %1347 = vmatpush.bf16.msra.mxu0 %v1334
        %1348 = vmatpush.bf16.msra.mxu0 %v1333
        %1349 = vmatpush.bf16.msra.mxu0 %v1332
        %1350 = vmatpush.bf16.msra.mxu0 %v1331
        %1351 = vmatmul.bf16.gmra.mxu0 %v1341
        %v1352 = vpop.f32.mrf.mxu0
        %v1353 = vadd.f32 %v1313, %v1352
        %v1354 = vpop.f32.mrf.mxu0
        %1355 = vdwg.mxu0
        %v1356 = vadd.f32 %v1255, %v1353
        %v1357 = vld [vmem:[%s830] sm:$0x1]
        %v1358 = vld [vmem:[%s693] sm:$0x1]
        %v1359 = vsel %vm901, %v1356, 0.0
        %1360 = vadd.xlane.f32.xlu0 %v1359
        %v1361 = vpop.xlane.xlu0 %1360
        %v1362 = vmul.f32 %v1361, %v1228
        %v1363 = vsub.f32 %v1356, %v1362
        %v1364 = vmul.f32 %v1363, %v1363
        %v1365 = vsel %vm901, %v1364, 0.0
        %1366 = vadd.xlane.f32.xlu0 %v1365
        %v1367 = vpop.xlane.xlu0 %1366
        %v1368 = vmul.f32 %v1367, %v1228
        %v1369 = vadd.f32 %v1368, 1e-05
        %v1370 = vrsqrt.pop %v1369
        %v1371 = vmul.f32 %v1370, %v1369
        %v1372 = vmul.f32 %v1371, %v1370
        %v1373 = vmul.f32 0.5, %v1372
        %v1374 = vsub.f32 1.5, %v1373
        %v1375 = vmul.f32 %v1370, %v1374
        %vm1376 = vweird.f32 %v1369
        %vm1377 = vweird.f32 %v1370
        %vm1378 = vmor %vm1376, %vm1377
        %v1379 = vsel %vm1378, %v1370, %v1375
        %v1380 = vmul.f32 %v1363, %v1379
        %v1382 = vperm.slane %v1357, 0
        %v1384 = vmul.f32 %v1380, %v1382
        %v1386 = vperm.slane %v1358, 0
        %v1388 = vadd.f32 %v1384, %v1386
        %1389 = vst.msk [vmem:[%s792] sm:$0xff] %vm901, %v1388
        %s1390 = sand.u32 %s465, 1
        %s1391 = scalar_lea.sflag [#allocation5], %s1390
        %s1392 = sand.u32 %s465, 1
        %s1393 = smul.addr %s1392, 8
        %s1394 = scalar_lea.vmem [#allocation12], %s1393
        // Predicated region
        $region109: #{tpu_custom_call.1} parent=83 // pred_check
          %p1395 = pneg %p475
        $region110: #{tpu_custom_call.1} parent=83 // pred_check_branch
          %1397 = sbr.rel (%p1395) target = $region112
        $region111: #{tpu_custom_call.1} parent=83 // pred_region
          %1399 = vsyncadd %s1391, 0
          %s1400 = smul.addr %s43, 8
          %s1401 = scalar_lea.hbm %s16, %s1400
          %s1403 = sshll.u32 %s1394, 4
          %s1404 = int_to_ptr.vmem [resolvable:$true] %s1403
          %s1405 = sshll.u32 %s1401, 4
          %s1406 = int_to_ptr.hbm [resolvable:$true] %s1405
          %1408 = dma.vmem_to_hbm [thread:$0]  %s1404, 128, %s1406, %s1391
        $region112: #{tpu_custom_call.1} parent=83 // pred_fallthru
          _
      $region84: #{tpu_custom_call.1} parent=5 // pred_fallthru
        _
      %p1409 = scmp.le.s32.totalorder 2, %s34
      // Predicated region
      $region113: #{tpu_custom_call.1} parent=5 // pred_check
        %p1410 = pneg %p1409
      $region114: #{tpu_custom_call.1} parent=5 // pred_check_branch
        %1412 = sbr.rel (%p1410) target = $region116
      $region115: #{tpu_custom_call.1} parent=5 // pred_region
        %s1413 = ssub.s32 %s34, 2
        // Predicated region
        $region117: #{tpu_custom_call.1} parent=115 // pred_check
          %p1414 = pneg %p481
        $region118: #{tpu_custom_call.1} parent=115 // pred_check_branch
          %1416 = sbr.rel (%p1414) target = $region120
        $region119: #{tpu_custom_call.1} parent=115 // pred_region
          %s1417 = sand.u32 %s466, 1
          %s1418 = scalar_lea.sflag [#allocation5], %s1417
          %s1419 = sand.u32 %s466, 1
          %s1420 = smul.addr %s1419, 8
          %s1421 = scalar_lea.vmem [#allocation12], %s1420
          %1423 = dma.done %s1418, 128
        $region120: #{tpu_custom_call.1} parent=115 // pred_fallthru
          _
      $region116: #{tpu_custom_call.1} parent=5 // pred_fallthru
        _
    $region6: #{tpu_custom_call.1} parent=1 // loop_footer
      %s38 = sadd.s32 1, %s34
    $region7: #{tpu_custom_call.1} parent=1 // loop_footer_branch
      %33 = sbr.rel target = $region3
    $region8: #{tpu_custom_call.1} parent=1 // loop_exit
      _
    %1424 = vsyncpa [#allocation4], 1
    %s1425 = scalar_lea.sflag [#allocation4], 1
    %1426 = vsyncpa %s1425, 1
    %1427 = vsyncpa [#allocation7], 1
    %s1428 = scalar_lea.sflag [#allocation7], 1
    %1429 = vsyncpa %s1428, 1
    %1430 = vsyncpa [#allocation10], 1
    %s1431 = scalar_lea.sflag [#allocation10], 1
    %1432 = vsyncpa %s1431, 1
    %1433 = vsyncpa [#allocation5], 1
    %s1434 = scalar_lea.sflag [#allocation5], 1
    %1435 = vsyncpa %s1434, 1

</llo_original>
